<compile_context>
chip_gen: v6e
topology: v6e:2x2x1
jax: 0.10.0
libtpu: 0.0.40
codegen_flags: <defaults>
</compile_context>

<pallas_src>
import jax
import jax.numpy as jnp
from jax.experimental import pallas as pl
from jax.experimental.pallas import tpu as pltpu

HIDDEN = 256


def _round_up(x, m):
    return (x + m - 1) // m * m


def _choose_tile(batch):
    """Pick (tile_b, b_pad).

    Batch lives on the lane axis, so tiles are multiples of 128.  Prefer
    large tiles (amortize per-grid-step pipeline overhead), keep padding
    waste bounded, and guarantee >= 2 grid steps whenever the batch allows
    it (v7x has 2 TensorCores to shard the "parallel" axis across).
    """
    b_min = _round_up(max(batch, 1), 128)
    if b_min <= 128:
        return 128, 128
    for tile in (2048, 1024, 512, 256, 128):
        b_pad = _round_up(batch, tile)
        if b_pad // tile >= 2 and (b_pad - batch) <= max(tile // 4, 128):
            return tile, b_pad
    return 128, b_min


# ----------------------------------------------------------------------------
# Kernel: one batch tile of the twin-MLP forward (transposed layout:
# activations are (features, batch_tile), batch on the lane axis).
# ----------------------------------------------------------------------------
def _critic2_kernel(sa_ref, w14_ref, b14_ref, w2_ref, b2_ref,
                    w5_ref, b5_ref, w3_ref, w6_ref, bh_ref, q_ref):
    # Layer 1, both towers fused into one MXU pass:
    #   y = [w1|w4]^T @ sa^T + [b1|b4]^T            -> (512, tile)
    y = jnp.dot(w14_ref[...], sa_ref[...],
                preferred_element_type=jnp.float32) + b14_ref[...]
    y = jnp.maximum(y, 0.0)
    h = y[:HIDDEN].astype(jnp.bfloat16)   # tower-1 hidden (sublane-aligned slice)
    g = y[HIDDEN:].astype(jnp.bfloat16)   # tower-2 hidden

    # Layer 2 per tower: bf16 MXU inputs, f32 accumulation, bias/ReLU in f32.
    h2 = jnp.maximum(
        jnp.dot(w2_ref[...], h, preferred_element_type=jnp.float32) + b2_ref[...],
        0.0)
    g2 = jnp.maximum(
        jnp.dot(w5_ref[...], g, preferred_element_type=jnp.float32) + b5_ref[...],
        0.0)

    # Output heads in f32 (tiny), producing lane-dense (1, tile) rows.
    q1 = jnp.dot(w3_ref[...], h2, preferred_element_type=jnp.float32)   # (1, tile)
    q2 = jnp.dot(w6_ref[...], g2, preferred_element_type=jnp.float32)   # (1, tile)

    # Lane-dense (2, tile) store: q1 in row 0, q2 in row 1.
    q_ref[...] = (jnp.concatenate([q1, q2], axis=0) + bh_ref[...]).astype(q_ref.dtype)


# ----------------------------------------------------------------------------
# Parameter packing: fuse layer-1 of both towers, transpose everything to the
# (out, in) orientation the kernel uses, bf16 for the big matmul weights,
# f32 for heads and biases.  Do this once, outside jit.
# ----------------------------------------------------------------------------
def pack_params(params):
    w14_t = jnp.concatenate([params["w1"], params["w4"]], axis=1).T    # (512, S+A)
    b14_t = jnp.concatenate([params["b1"], params["b4"]], axis=1).T    # (512, 1)
    b_heads = jnp.concatenate([params["b3"], params["b6"]], axis=1).T  # (2, 1)
    return dict(
        w14_t=w14_t.astype(jnp.bfloat16),
        b14_t=b14_t.astype(jnp.float32),
        w2_t=params["w2"].T.astype(jnp.bfloat16),   # (256, 256)
        b2_t=params["b2"].T.astype(jnp.float32),    # (256, 1)
        w5_t=params["w5"].T.astype(jnp.bfloat16),
        b5_t=params["b5"].T.astype(jnp.float32),
        w3_t=params["w3"].T.astype(jnp.float32),    # (1, 256) f32 head
        w6_t=params["w6"].T.astype(jnp.float32),
        b_heads=b_heads.astype(jnp.float32),
    )


@jax.jit
def critic2_forward(state, action, packed):
    """Returns (q1, q2), each of shape (B, 1) float32."""
    B = state.shape[0]
    sa_dim = state.shape[1] + action.shape[1]

    # sa = [state | action] in bf16, transposed so batch sits on the lane axis.
    sa_t = jnp.concatenate([state, action], axis=1).astype(jnp.bfloat16).T  # (S+A, B)

    tile_b, b_pad = _choose_tile(B)
    if b_pad != B:
        sa_t = jnp.pad(sa_t, ((0, 0), (0, b_pad - B)))

    grid = (b_pad // tile_b,)

    def const_spec(arr):
        # Whole array, constant block index -> stays resident in VMEM,
        # no re-DMA across grid steps.
        return pl.BlockSpec(arr.shape, lambda i: (0, 0))

    in_specs = [
        pl.BlockSpec((sa_dim, tile_b), lambda i: (0, i)),   # sa batch tile
        const_spec(packed["w14_t"]), const_spec(packed["b14_t"]),
        const_spec(packed["w2_t"]), const_spec(packed["b2_t"]),
        const_spec(packed["w5_t"]), const_spec(packed["b5_t"]),
        const_spec(packed["w3_t"]), const_spec(packed["w6_t"]),
        const_spec(packed["b_heads"]),
    ]

    # Advisory cost estimate for XLA's scheduler.
    flops = 2 * b_pad * (sa_dim * 2 * HIDDEN      # fused layer 1
                         + 2 * HIDDEN * HIDDEN    # layer 2, both towers
                         + 2 * HIDDEN)            # output heads
    weight_bytes = (2 * (2 * HIDDEN * sa_dim + 2 * HIDDEN * HIDDEN)
                    + 4 * (2 * HIDDEN + 2 * HIDDEN + 2 * HIDDEN + 2))
    bytes_accessed = 2 * b_pad * sa_dim + weight_bytes + 4 * 2 * b_pad
    cost = pl.CostEstimate(flops=flops, transcendentals=0,
                           bytes_accessed=bytes_accessed)

    q_t = pl.pallas_call(
        _critic2_kernel,
        out_shape=jax.ShapeDtypeStruct((2, b_pad), jnp.float32),
        grid=grid,
        in_specs=in_specs,
        out_specs=pl.BlockSpec((2, tile_b), lambda i: (0, i)),
        compiler_params=pltpu.CompilerParams(
            dimension_semantics=("parallel",),
            # Covers v5e's 16 MiB scoped default at the largest (2048) tile;
            # v6e/v7x defaults are already 32 MiB.
            vmem_limit_bytes=32 * 1024 * 1024,
        ),
        cost_estimate=cost,
    )(sa_t,
      packed["w14_t"], packed["b14_t"],
      packed["w2_t"], packed["b2_t"],
      packed["w5_t"], packed["b5_t"],
      packed["w3_t"], packed["w6_t"],
      packed["b_heads"])

    q1 = q_t[0, :B].reshape(B, 1)
    q2 = q_t[1, :B].reshape(B, 1)
    return q1, q2


# ----------------------------------------------------------------------------
# Deterministic parameter init (mimics PyTorch nn.Linear default: U(-k, k)
# with k = 1/sqrt(fan_in)).  Weights stored as (in, out); biases as (1, out).
# ----------------------------------------------------------------------------
def init_params(key, state_dim, action_dim, hidden=HIDDEN):
    sa_dim = state_dim + action_dim
    dims = [
        ("w1", "b1", sa_dim, hidden),
        ("w2", "b2", hidden, hidden),
        ("w3", "b3", hidden, 1),
        ("w4", "b4", sa_dim, hidden),
        ("w5", "b5", hidden, hidden),
        ("w6", "b6", hidden, 1),
    ]
    params = {}
    for wname, bname, fan_in, fan_out in dims:
        key, kw, kb = jax.random.split(key, 3)
        lim = 1.0 / jnp.sqrt(jnp.float32(fan_in))
        params[wname] = jax.random.uniform(
            kw, (fan_in, fan_out), jnp.float32, minval=-lim, maxval=lim)
        params[bname] = jax.random.uniform(
            kb, (1, fan_out), jnp.float32, minval=-lim, maxval=lim)
    return params


# ----------------------------------------------------------------------------
# Reference (pure JAX, f32) for a sanity check.
# ----------------------------------------------------------------------------
def critic2_ref(state, action, p):
    sa = jnp.concatenate([state, action], axis=1)
    h = jnp.maximum(sa @ p["w1"] + p["b1"], 0.0)
    h = jnp.maximum(h @ p["w2"] + p["b2"], 0.0)
    q1 = h @ p["w3"] + p["b3"]
    g = jnp.maximum(sa @ p["w4"] + p["b4"], 0.0)
    g = jnp.maximum(g @ p["w5"] + p["b5"], 0.0)
    q2 = g @ p["w6"] + p["b6"]
    return q1, q2


if __name__ == "__main__":
    key = jax.random.PRNGKey(0)
    k_state, k_action, k_params = jax.random.split(key, 3)

    batch, state_dim, action_dim = 2, 16, 8
    state = jax.random.normal(k_state, (batch, state_dim), jnp.float32)
    action = jax.random.normal(k_action, (batch, action_dim), jnp.float32)
    params = init_params(k_params, state_dim, action_dim)
    packed = pack_params(params)

    q1, q2 = critic2_forward(state, action, packed)
    jax.block_until_ready((q1, q2))

    r1, r2 = critic2_ref(state, action, params)
    assert q1.shape == (batch, 1) and q2.shape == (batch, 1)
    # bf16 matmul inputs with f32 accumulation (f32 output heads) vs f32 ref.
    assert jnp.allclose(q1, r1, atol=5e-2, rtol=5e-2), "q1 mismatch vs reference"
    assert jnp.allclose(q2, r2, atol=5e-2, rtol=5e-2), "q2 mismatch vs reference"

    print("KERNEL_OK")
</pallas_src>

<mosaic_0001>
module attributes {stable_mosaic.version = 11 : i64} {
  func.func @_critic2_kernel(%arg0: i32, %arg1: memref<24x128xbf16, #tpu.memory_space<vmem>>, %arg2: memref<512x24xbf16, #tpu.memory_space<vmem>>, %arg3: memref<512x1xf32, #tpu.memory_space<vmem>>, %arg4: memref<256x256xbf16, #tpu.memory_space<vmem>>, %arg5: memref<256x1xf32, #tpu.memory_space<vmem>>, %arg6: memref<256x256xbf16, #tpu.memory_space<vmem>>, %arg7: memref<256x1xf32, #tpu.memory_space<vmem>>, %arg8: memref<1x256xf32, #tpu.memory_space<vmem>>, %arg9: memref<1x256xf32, #tpu.memory_space<vmem>>, %arg10: memref<2x1xf32, #tpu.memory_space<vmem>>, %arg11: memref<2x128xf32, #tpu.memory_space<vmem>>) attributes {dimension_semantics = [#tpu.dimension_semantics<parallel>], iteration_bounds = array<i64: 1>, scalar_prefetch = 0 : i64, scratch_operands = 0 : i64, tpu.core_type = #tpu.core_type<tc>, window_params = [{transform_indices = @transform_0, window_bounds = array<i64: 24, 128>}, {pipeline_mode = #tpu.pipeline_mode<synchronous>, transform_indices = @transform_1, window_bounds = array<i64: 512, 24>}, {pipeline_mode = #tpu.pipeline_mode<synchronous>, transform_indices = @transform_2, window_bounds = array<i64: 512, 1>}, {pipeline_mode = #tpu.pipeline_mode<synchronous>, transform_indices = @transform_3, window_bounds = array<i64: 256, 256>}, {pipeline_mode = #tpu.pipeline_mode<synchronous>, transform_indices = @transform_4, window_bounds = array<i64: 256, 1>}, {pipeline_mode = #tpu.pipeline_mode<synchronous>, transform_indices = @transform_5, window_bounds = array<i64: 256, 256>}, {pipeline_mode = #tpu.pipeline_mode<synchronous>, transform_indices = @transform_6, window_bounds = array<i64: 256, 1>}, {pipeline_mode = #tpu.pipeline_mode<synchronous>, transform_indices = @transform_7, window_bounds = array<i64: 1, 256>}, {pipeline_mode = #tpu.pipeline_mode<synchronous>, transform_indices = @transform_8, window_bounds = array<i64: 1, 256>}, {pipeline_mode = #tpu.pipeline_mode<synchronous>, transform_indices = @transform_9, window_bounds = array<i64: 2, 1>}, {transform_indices = @transform_10, window_bounds = array<i64: 2, 128>}]} {
    %c0 = arith.constant 0 : index
    %c0_0 = arith.constant 0 : index
    %0 = vector.load %arg2[%c0, %c0_0] : memref<512x24xbf16, #tpu.memory_space<vmem>>, vector<512x24xbf16>
    %c0_1 = arith.constant 0 : index
    %c0_2 = arith.constant 0 : index
    %1 = vector.load %arg1[%c0_1, %c0_2] : memref<24x128xbf16, #tpu.memory_space<vmem>>, vector<24x128xbf16>
    %cst = arith.constant dense<0.000000e+00> : vector<512x128xf32>
    %2 = tpu.matmul %0, %1, %cst {dimension_numbers = #tpu.dot_dimension_numbers<[1], [0], [0], [1], [0, 0, 1, 1], [], []>} : vector<512x24xbf16>, vector<24x128xbf16>, vector<512x128xf32> -> vector<512x128xf32>
    %c0_3 = arith.constant 0 : index
    %c0_4 = arith.constant 0 : index
    %3 = vector.load %arg3[%c0_3, %c0_4] : memref<512x1xf32, #tpu.memory_space<vmem>>, vector<512x1xf32>
    %4 = vector.broadcast %3 : vector<512x1xf32> to vector<512x128xf32>
    %5 = arith.addf %2, %4 : vector<512x128xf32>
    %cst_5 = arith.constant 0.000000e+00 : f32
    %6 = vector.broadcast %cst_5 : f32 to vector<512x128xf32>
    %7 = arith.maximumf %5, %6 : vector<512x128xf32>
    %8 = vector.extract_strided_slice %7 {offsets = [0, 0], sizes = [256, 128], strides = [1, 1]} : vector<512x128xf32> to vector<256x128xf32>
    %9 = arith.truncf %8 : vector<256x128xf32> to vector<256x128xbf16>
    %10 = vector.extract_strided_slice %7 {offsets = [256, 0], sizes = [256, 128], strides = [1, 1]} : vector<512x128xf32> to vector<256x128xf32>
    %11 = arith.truncf %10 : vector<256x128xf32> to vector<256x128xbf16>
    %c0_6 = arith.constant 0 : index
    %c0_7 = arith.constant 0 : index
    %12 = vector.load %arg4[%c0_6, %c0_7] : memref<256x256xbf16, #tpu.memory_space<vmem>>, vector<256x256xbf16>
    %cst_8 = arith.constant dense<0.000000e+00> : vector<256x128xf32>
    %13 = tpu.matmul %12, %9, %cst_8 {dimension_numbers = #tpu.dot_dimension_numbers<[1], [0], [0], [1], [0, 0, 1, 1], [], []>} : vector<256x256xbf16>, vector<256x128xbf16>, vector<256x128xf32> -> vector<256x128xf32>
    %c0_9 = arith.constant 0 : index
    %c0_10 = arith.constant 0 : index
    %14 = vector.load %arg5[%c0_9, %c0_10] : memref<256x1xf32, #tpu.memory_space<vmem>>, vector<256x1xf32>
    %15 = vector.broadcast %14 : vector<256x1xf32> to vector<256x128xf32>
    %16 = arith.addf %13, %15 : vector<256x128xf32>
    %cst_11 = arith.constant 0.000000e+00 : f32
    %17 = vector.broadcast %cst_11 : f32 to vector<256x128xf32>
    %18 = arith.maximumf %16, %17 : vector<256x128xf32>
    %c0_12 = arith.constant 0 : index
    %c0_13 = arith.constant 0 : index
    %19 = vector.load %arg6[%c0_12, %c0_13] : memref<256x256xbf16, #tpu.memory_space<vmem>>, vector<256x256xbf16>
    %cst_14 = arith.constant dense<0.000000e+00> : vector<256x128xf32>
    %20 = tpu.matmul %19, %11, %cst_14 {dimension_numbers = #tpu.dot_dimension_numbers<[1], [0], [0], [1], [0, 0, 1, 1], [], []>} : vector<256x256xbf16>, vector<256x128xbf16>, vector<256x128xf32> -> vector<256x128xf32>
    %c0_15 = arith.constant 0 : index
    %c0_16 = arith.constant 0 : index
    %21 = vector.load %arg7[%c0_15, %c0_16] : memref<256x1xf32, #tpu.memory_space<vmem>>, vector<256x1xf32>
    %22 = vector.broadcast %21 : vector<256x1xf32> to vector<256x128xf32>
    %23 = arith.addf %20, %22 : vector<256x128xf32>
    %cst_17 = arith.constant 0.000000e+00 : f32
    %24 = vector.broadcast %cst_17 : f32 to vector<256x128xf32>
    %25 = arith.maximumf %23, %24 : vector<256x128xf32>
    %c0_18 = arith.constant 0 : index
    %c0_19 = arith.constant 0 : index
    %26 = vector.load %arg8[%c0_18, %c0_19] : memref<1x256xf32, #tpu.memory_space<vmem>>, vector<1x256xf32>
    %cst_20 = arith.constant dense<0.000000e+00> : vector<1x128xf32>
    %27 = tpu.matmul %26, %18, %cst_20 {dimension_numbers = #tpu.dot_dimension_numbers<[1], [0], [0], [1], [0, 0, 1, 1], [], []>} : vector<1x256xf32>, vector<256x128xf32>, vector<1x128xf32> -> vector<1x128xf32>
    %c0_21 = arith.constant 0 : index
    %c0_22 = arith.constant 0 : index
    %28 = vector.load %arg9[%c0_21, %c0_22] : memref<1x256xf32, #tpu.memory_space<vmem>>, vector<1x256xf32>
    %cst_23 = arith.constant dense<0.000000e+00> : vector<1x128xf32>
    %29 = tpu.matmul %28, %25, %cst_23 {dimension_numbers = #tpu.dot_dimension_numbers<[1], [0], [0], [1], [0, 0, 1, 1], [], []>} : vector<1x256xf32>, vector<256x128xf32>, vector<1x128xf32> -> vector<1x128xf32>
    %30 = tpu.concatenate %27, %29 in 0 : vector<1x128xf32>, vector<1x128xf32> -> vector<2x128xf32>
    %c0_24 = arith.constant 0 : index
    %c0_25 = arith.constant 0 : index
    %31 = vector.load %arg10[%c0_24, %c0_25] : memref<2x1xf32, #tpu.memory_space<vmem>>, vector<2x1xf32>
    %32 = vector.broadcast %31 : vector<2x1xf32> to vector<2x128xf32>
    %33 = arith.addf %30, %32 : vector<2x128xf32>
    %c0_26 = arith.constant 0 : index
    %c0_27 = arith.constant 0 : index
    %34 = vector.load %arg11[%c0_26, %c0_27] : memref<2x128xf32, #tpu.memory_space<vmem>>, vector<2x128xf32>
    tpu.vector_store %arg11[%c0_26, %c0_27], %33 {strides = array<i32>} : memref<2x128xf32, #tpu.memory_space<vmem>>, vector<2x128xf32>,
    return
  }
  func.func @transform_0(%arg0: i32) -> (i32, i32) {
    %c0_i32 = arith.constant 0 : i32
    %c0_i32_0 = arith.constant 0 : i32
    return %c0_i32, %arg0 : i32, i32
  }
  func.func @transform_1(%arg0: i32) -> (i32, i32) {
    %c0_i32 = arith.constant 0 : i32
    %c0_i32_0 = arith.constant 0 : i32
    %c0_i32_1 = arith.constant 0 : i32
    return %c0_i32, %c0_i32_0 : i32, i32
  }
  func.func @transform_2(%arg0: i32) -> (i32, i32) {
    %c0_i32 = arith.constant 0 : i32
    %c0_i32_0 = arith.constant 0 : i32
    %c0_i32_1 = arith.constant 0 : i32
    return %c0_i32, %c0_i32_0 : i32, i32
  }
  func.func @transform_3(%arg0: i32) -> (i32, i32) {
    %c0_i32 = arith.constant 0 : i32
    %c0_i32_0 = arith.constant 0 : i32
    %c0_i32_1 = arith.constant 0 : i32
    return %c0_i32, %c0_i32_0 : i32, i32
  }
  func.func @transform_4(%arg0: i32) -> (i32, i32) {
    %c0_i32 = arith.constant 0 : i32
    %c0_i32_0 = arith.constant 0 : i32
    %c0_i32_1 = arith.constant 0 : i32
    return %c0_i32, %c0_i32_0 : i32, i32
  }
  func.func @transform_5(%arg0: i32) -> (i32, i32) {
    %c0_i32 = arith.constant 0 : i32
    %c0_i32_0 = arith.constant 0 : i32
    %c0_i32_1 = arith.constant 0 : i32
    return %c0_i32, %c0_i32_0 : i32, i32
  }
  func.func @transform_6(%arg0: i32) -> (i32, i32) {
    %c0_i32 = arith.constant 0 : i32
    %c0_i32_0 = arith.constant 0 : i32
    %c0_i32_1 = arith.constant 0 : i32
    return %c0_i32, %c0_i32_0 : i32, i32
  }
  func.func @transform_7(%arg0: i32) -> (i32, i32) {
    %c0_i32 = arith.constant 0 : i32
    %c0_i32_0 = arith.constant 0 : i32
    %c0_i32_1 = arith.constant 0 : i32
    return %c0_i32, %c0_i32_0 : i32, i32
  }
  func.func @transform_8(%arg0: i32) -> (i32, i32) {
    %c0_i32 = arith.constant 0 : i32
    %c0_i32_0 = arith.constant 0 : i32
    %c0_i32_1 = arith.constant 0 : i32
    return %c0_i32, %c0_i32_0 : i32, i32
  }
  func.func @transform_9(%arg0: i32) -> (i32, i32) {
    %c0_i32 = arith.constant 0 : i32
    %c0_i32_0 = arith.constant 0 : i32
    %c0_i32_1 = arith.constant 0 : i32
    return %c0_i32, %c0_i32_0 : i32, i32
  }
  func.func @transform_10(%arg0: i32) -> (i32, i32) {
    %c0_i32 = arith.constant 0 : i32
    %c0_i32_0 = arith.constant 0 : i32
    return %c0_i32, %arg0 : i32, i32
  }
}

</mosaic_0001>

<llo_original>
// kernel: critic2_forward.1
$region0: #{critic2_forward.1}
  #allocation0 [shape = 'u32[]', space=smem, size = 0x4, offset = 0x4, fixed_abs, tag = 'smem constant byte address 0x4 - core index']
  #allocation1 [shape = 'u32[144,128]{1,0:T(1,128)}', space=vmem, size = 0x12000, scoped, tag = 'internal scratch']
  %s0 = inlined_call_operand.vmem [shape: bf16[24,128], index: 0, kind: input, shape index: {}]
  %s1 = inlined_call_operand.vmem [shape: bf16[512,24], index: 1, kind: input, shape index: {}]
  %s2 = inlined_call_operand.vmem [shape: f32[512,1], index: 2, kind: input, shape index: {}]
  %s3 = inlined_call_operand.vmem [shape: bf16[256,256], index: 3, kind: input, shape index: {}]
  %s4 = inlined_call_operand.vmem [shape: f32[256,1], index: 4, kind: input, shape index: {}]
  %s5 = inlined_call_operand.vmem [shape: bf16[256,256], index: 5, kind: input, shape index: {}]
  %s6 = inlined_call_operand.vmem [shape: f32[256,1], index: 6, kind: input, shape index: {}]
  %s7 = inlined_call_operand.vmem [shape: f32[1,256], index: 7, kind: input, shape index: {}]
  %s8 = inlined_call_operand.vmem [shape: f32[1,256], index: 8, kind: input, shape index: {}]
  %s9 = inlined_call_operand.vmem [shape: f32[2,1], index: 9, kind: input, shape index: {}]
  %s10 = inlined_call_operand.vmem [shape: f32[2,128], index: 10, kind: output, shape index: {}]
  %s11 = sld [smem:[#allocation0]]
  $region50: #{critic2_forward.1} parent=0
    _
  %s13 = ssub.s32 1, %s11
  %s14 = scalar_select 0, %s13, %s11
  // Predicated region
  $region2: #{critic2_forward.1} parent=0 // pred_check
    _
  $region3: #{critic2_forward.1} parent=0 // pred_check_branch
    %16 = sbr.rel (0) target = $region5
  $region4: #{critic2_forward.1} parent=0 // pred_region
    _
  $region5: #{critic2_forward.1} parent=0 // pred_fallthru
    _
  // Predicated region
  $region6: #{critic2_forward.1} parent=0 // pred_check
    _
  $region7: #{critic2_forward.1} parent=0 // pred_check_branch
    %18 = sbr.rel (0) target = $region9
  $region8: #{critic2_forward.1} parent=0 // pred_region
    _
  $region9: #{critic2_forward.1} parent=0 // pred_fallthru
    _
  // Predicated region
  $region10: #{critic2_forward.1} parent=0 // pred_check
    _
  $region11: #{critic2_forward.1} parent=0 // pred_check_branch
    %20 = sbr.rel (0) target = $region13
  $region12: #{critic2_forward.1} parent=0 // pred_region
    _
  $region13: #{critic2_forward.1} parent=0 // pred_fallthru
    _
  // Predicated region
  $region14: #{critic2_forward.1} parent=0 // pred_check
    _
  $region15: #{critic2_forward.1} parent=0 // pred_check_branch
    %22 = sbr.rel (0) target = $region17
  $region16: #{critic2_forward.1} parent=0 // pred_region
    _
  $region17: #{critic2_forward.1} parent=0 // pred_fallthru
    _
  // Predicated region
  $region18: #{critic2_forward.1} parent=0 // pred_check
    _
  $region19: #{critic2_forward.1} parent=0 // pred_check_branch
    %24 = sbr.rel (0) target = $region21
  $region20: #{critic2_forward.1} parent=0 // pred_region
    _
  $region21: #{critic2_forward.1} parent=0 // pred_fallthru
    _
  // Predicated region
  $region22: #{critic2_forward.1} parent=0 // pred_check
    _
  $region23: #{critic2_forward.1} parent=0 // pred_check_branch
    %26 = sbr.rel (0) target = $region25
  $region24: #{critic2_forward.1} parent=0 // pred_region
    _
  $region25: #{critic2_forward.1} parent=0 // pred_fallthru
    _
  // Predicated region
  $region26: #{critic2_forward.1} parent=0 // pred_check
    _
  $region27: #{critic2_forward.1} parent=0 // pred_check_branch
    %28 = sbr.rel (0) target = $region29
  $region28: #{critic2_forward.1} parent=0 // pred_region
    _
  $region29: #{critic2_forward.1} parent=0 // pred_fallthru
    _
  // Predicated region
  $region30: #{critic2_forward.1} parent=0 // pred_check
    _
  $region31: #{critic2_forward.1} parent=0 // pred_check_branch
    %30 = sbr.rel (0) target = $region33
  $region32: #{critic2_forward.1} parent=0 // pred_region
    _
  $region33: #{critic2_forward.1} parent=0 // pred_fallthru
    _
  // Predicated region
  $region34: #{critic2_forward.1} parent=0 // pred_check
    _
  $region35: #{critic2_forward.1} parent=0 // pred_check_branch
    %32 = sbr.rel (0) target = $region37
  $region36: #{critic2_forward.1} parent=0 // pred_region
    _
  $region37: #{critic2_forward.1} parent=0 // pred_fallthru
    _
  // Predicated region
  $region38: #{critic2_forward.1} parent=0 // pred_check
    _
  $region39: #{critic2_forward.1} parent=0 // pred_check_branch
    %34 = sbr.rel (0) target = $region41
  $region40: #{critic2_forward.1} parent=0 // pred_region
    _
  $region41: #{critic2_forward.1} parent=0 // pred_fallthru
    _
  %v36 = vld [vmem:[%s1] sm:$0xf]
  %v37 = vld [vmem:[%s1 + $0x4] sm:$0xf]
  %v38 = vld [vmem:[%s1 + $0x8] sm:$0xf]
  %v39 = vld [vmem:[%s1 + $0xc] sm:$0xf]
  %v40 = vld [vmem:[%s1 + $0x10] sm:$0xf]
  %v41 = vld [vmem:[%s1 + $0x14] sm:$0xf]
  %v42 = vld [vmem:[%s1 + $0x18] sm:$0xf]
  %v43 = vld [vmem:[%s1 + $0x1c] sm:$0xf]
  %v44 = vld [vmem:[%s1 + $0x20] sm:$0xf]
  %v45 = vld [vmem:[%s1 + $0x24] sm:$0xf]
  %v46 = vld [vmem:[%s1 + $0x28] sm:$0xf]
  %v47 = vld [vmem:[%s1 + $0x2c] sm:$0xf]
  %v48 = vld [vmem:[%s1 + $0x30] sm:$0xf]
  %v49 = vld [vmem:[%s1 + $0x34] sm:$0xf]
  %v50 = vld [vmem:[%s1 + $0x38] sm:$0xf]
  %v51 = vld [vmem:[%s1 + $0x3c] sm:$0xf]
  %v52 = vld [vmem:[%s1 + $0x40] sm:$0xf]
  %v53 = vld [vmem:[%s1 + $0x44] sm:$0xf]
  %v54 = vld [vmem:[%s1 + $0x48] sm:$0xf]
  %v55 = vld [vmem:[%s1 + $0x4c] sm:$0xf]
  %v56 = vld [vmem:[%s1 + $0x50] sm:$0xf]
  %v57 = vld [vmem:[%s1 + $0x54] sm:$0xf]
  %v58 = vld [vmem:[%s1 + $0x58] sm:$0xf]
  %v59 = vld [vmem:[%s1 + $0x5c] sm:$0xf]
  %v60 = vld [vmem:[%s1 + $0x60] sm:$0xf]
  %v61 = vld [vmem:[%s1 + $0x64] sm:$0xf]
  %v62 = vld [vmem:[%s1 + $0x68] sm:$0xf]
  %v63 = vld [vmem:[%s1 + $0x6c] sm:$0xf]
  %v64 = vld [vmem:[%s1 + $0x70] sm:$0xf]
  %v65 = vld [vmem:[%s1 + $0x74] sm:$0xf]
  %v66 = vld [vmem:[%s1 + $0x78] sm:$0xf]
  %v67 = vld [vmem:[%s1 + $0x7c] sm:$0xf]
  %v68 = vld [vmem:[%s1 + $0x80] sm:$0xf]
  %v69 = vld [vmem:[%s1 + $0x84] sm:$0xf]
  %v70 = vld [vmem:[%s1 + $0x88] sm:$0xf]
  %v71 = vld [vmem:[%s1 + $0x8c] sm:$0xf]
  %v72 = vld [vmem:[%s1 + $0x90] sm:$0xf]
  %v73 = vld [vmem:[%s1 + $0x94] sm:$0xf]
  %v74 = vld [vmem:[%s1 + $0x98] sm:$0xf]
  %v75 = vld [vmem:[%s1 + $0x9c] sm:$0xf]
  %v76 = vld [vmem:[%s1 + $0xa0] sm:$0xf]
  %v77 = vld [vmem:[%s1 + $0xa4] sm:$0xf]
  %v78 = vld [vmem:[%s1 + $0xa8] sm:$0xf]
  %v79 = vld [vmem:[%s1 + $0xac] sm:$0xf]
  %v80 = vld [vmem:[%s1 + $0xb0] sm:$0xf]
  %v81 = vld [vmem:[%s1 + $0xb4] sm:$0xf]
  %v82 = vld [vmem:[%s1 + $0xb8] sm:$0xf]
  %v83 = vld [vmem:[%s1 + $0xbc] sm:$0xf]
  %v84 = vld [vmem:[%s1 + $0xc0] sm:$0xf]
  %v85 = vld [vmem:[%s1 + $0xc4] sm:$0xf]
  %v86 = vld [vmem:[%s1 + $0xc8] sm:$0xf]
  %v87 = vld [vmem:[%s1 + $0xcc] sm:$0xf]
  %v88 = vld [vmem:[%s1 + $0xd0] sm:$0xf]
  %v89 = vld [vmem:[%s1 + $0xd4] sm:$0xf]
  %v90 = vld [vmem:[%s1 + $0xd8] sm:$0xf]
  %v91 = vld [vmem:[%s1 + $0xdc] sm:$0xf]
  %v92 = vld [vmem:[%s1 + $0xe0] sm:$0xf]
  %v93 = vld [vmem:[%s1 + $0xe4] sm:$0xf]
  %v94 = vld [vmem:[%s1 + $0xe8] sm:$0xf]
  %v95 = vld [vmem:[%s1 + $0xec] sm:$0xf]
  %v96 = vld [vmem:[%s1 + $0xf0] sm:$0xf]
  %v97 = vld [vmem:[%s1 + $0xf4] sm:$0xf]
  %v98 = vld [vmem:[%s1 + $0xf8] sm:$0xf]
  %v99 = vld [vmem:[%s1 + $0xfc] sm:$0xf]
  %v100 = vld [vmem:[%s0] sm:$0xf]
  %v101 = vld [vmem:[%s0 + $0x4] sm:$0xf]
  %v102 = vld [vmem:[%s0 + $0x8] sm:$0xf]
  %v103 = vld [vmem:[%s2] sm:$0xff]
  %v104 = vld [vmem:[%s2 + $0x8] sm:$0xff]
  %v105 = vld [vmem:[%s2 + $0x10] sm:$0xff]
  %v106 = vld [vmem:[%s2 + $0x18] sm:$0xff]
  %v107 = vld [vmem:[%s2 + $0x20] sm:$0xff]
  %v108 = vld [vmem:[%s2 + $0x28] sm:$0xff]
  %v109 = vld [vmem:[%s2 + $0x30] sm:$0xff]
  %v110 = vld [vmem:[%s2 + $0x38] sm:$0xff]
  %v111 = vld [vmem:[%s2 + $0x40] sm:$0xff]
  %v112 = vld [vmem:[%s2 + $0x48] sm:$0xff]
  %v113 = vld [vmem:[%s2 + $0x50] sm:$0xff]
  %v114 = vld [vmem:[%s2 + $0x58] sm:$0xff]
  %v115 = vld [vmem:[%s2 + $0x60] sm:$0xff]
  %v116 = vld [vmem:[%s2 + $0x68] sm:$0xff]
  %v117 = vld [vmem:[%s2 + $0x70] sm:$0xff]
  %v118 = vld [vmem:[%s2 + $0x78] sm:$0xff]
  %v119 = vld [vmem:[%s2 + $0x80] sm:$0xff]
  %v120 = vld [vmem:[%s2 + $0x88] sm:$0xff]
  %v121 = vld [vmem:[%s2 + $0x90] sm:$0xff]
  %v122 = vld [vmem:[%s2 + $0x98] sm:$0xff]
  %v123 = vld [vmem:[%s2 + $0xa0] sm:$0xff]
  %v124 = vld [vmem:[%s2 + $0xa8] sm:$0xff]
  %v125 = vld [vmem:[%s2 + $0xb0] sm:$0xff]
  %v126 = vld [vmem:[%s2 + $0xb8] sm:$0xff]
  %v127 = vld [vmem:[%s2 + $0xc0] sm:$0xff]
  %v128 = vld [vmem:[%s2 + $0xc8] sm:$0xff]
  %v129 = vld [vmem:[%s2 + $0xd0] sm:$0xff]
  %v130 = vld [vmem:[%s2 + $0xd8] sm:$0xff]
  %v131 = vld [vmem:[%s2 + $0xe0] sm:$0xff]
  %v132 = vld [vmem:[%s2 + $0xe8] sm:$0xff]
  %v133 = vld [vmem:[%s2 + $0xf0] sm:$0xff]
  %v134 = vld [vmem:[%s2 + $0xf8] sm:$0xff]
  %v135 = vld [vmem:[%s2 + $0x100] sm:$0xff]
  %v136 = vld [vmem:[%s2 + $0x108] sm:$0xff]
  %v137 = vld [vmem:[%s2 + $0x110] sm:$0xff]
  %v138 = vld [vmem:[%s2 + $0x118] sm:$0xff]
  %v139 = vld [vmem:[%s2 + $0x120] sm:$0xff]
  %v140 = vld [vmem:[%s2 + $0x128] sm:$0xff]
  %v141 = vld [vmem:[%s2 + $0x130] sm:$0xff]
  %v142 = vld [vmem:[%s2 + $0x138] sm:$0xff]
  %v143 = vld [vmem:[%s2 + $0x140] sm:$0xff]
  %v144 = vld [vmem:[%s2 + $0x148] sm:$0xff]
  %v145 = vld [vmem:[%s2 + $0x150] sm:$0xff]
  %v146 = vld [vmem:[%s2 + $0x158] sm:$0xff]
  %v147 = vld [vmem:[%s2 + $0x160] sm:$0xff]
  %v148 = vld [vmem:[%s2 + $0x168] sm:$0xff]
  %v149 = vld [vmem:[%s2 + $0x170] sm:$0xff]
  %v150 = vld [vmem:[%s2 + $0x178] sm:$0xff]
  %v151 = vld [vmem:[%s2 + $0x180] sm:$0xff]
  %v152 = vld [vmem:[%s2 + $0x188] sm:$0xff]
  %v153 = vld [vmem:[%s2 + $0x190] sm:$0xff]
  %v154 = vld [vmem:[%s2 + $0x198] sm:$0xff]
  %v155 = vld [vmem:[%s2 + $0x1a0] sm:$0xff]
  %v156 = vld [vmem:[%s2 + $0x1a8] sm:$0xff]
  %v157 = vld [vmem:[%s2 + $0x1b0] sm:$0xff]
  %v158 = vld [vmem:[%s2 + $0x1b8] sm:$0xff]
  %v159 = vld [vmem:[%s2 + $0x1c0] sm:$0xff]
  %v160 = vld [vmem:[%s2 + $0x1c8] sm:$0xff]
  %v161 = vld [vmem:[%s2 + $0x1d0] sm:$0xff]
  %v162 = vld [vmem:[%s2 + $0x1d8] sm:$0xff]
  %v163 = vld [vmem:[%s2 + $0x1e0] sm:$0xff]
  %v164 = vld [vmem:[%s2 + $0x1e8] sm:$0xff]
  %v165 = vld [vmem:[%s2 + $0x1f0] sm:$0xff]
  %v166 = vld [vmem:[%s2 + $0x1f8] sm:$0xff]
  %168 = vset.pattern.permute.xlu0 0
  %169 = vperm.xlu0 %168, %v103
  %v170 = vpop.permute.xlu0 %169
  %173 = vset.pattern.permute.xlu0 0
  %174 = vperm.xlu0 %173, %v104
  %v175 = vpop.permute.xlu0 %174
  %178 = vset.pattern.permute.xlu0 0
  %179 = vperm.xlu0 %178, %v105
  %v180 = vpop.permute.xlu0 %179
  %183 = vset.pattern.permute.xlu0 0
  %184 = vperm.xlu0 %183, %v106
  %v185 = vpop.permute.xlu0 %184
  %188 = vset.pattern.permute.xlu0 0
  %189 = vperm.xlu0 %188, %v107
  %v190 = vpop.permute.xlu0 %189
  %193 = vset.pattern.permute.xlu0 0
  %194 = vperm.xlu0 %193, %v108
  %v195 = vpop.permute.xlu0 %194
  %198 = vset.pattern.permute.xlu0 0
  %199 = vperm.xlu0 %198, %v109
  %v200 = vpop.permute.xlu0 %199
  %203 = vset.pattern.permute.xlu0 0
  %204 = vperm.xlu0 %203, %v110
  %v205 = vpop.permute.xlu0 %204
  %208 = vset.pattern.permute.xlu0 0
  %209 = vperm.xlu0 %208, %v111
  %v210 = vpop.permute.xlu0 %209
  %213 = vset.pattern.permute.xlu0 0
  %214 = vperm.xlu0 %213, %v112
  %v215 = vpop.permute.xlu0 %214
  %218 = vset.pattern.permute.xlu0 0
  %219 = vperm.xlu0 %218, %v113
  %v220 = vpop.permute.xlu0 %219
  %223 = vset.pattern.permute.xlu0 0
  %224 = vperm.xlu0 %223, %v114
  %v225 = vpop.permute.xlu0 %224
  %228 = vset.pattern.permute.xlu0 0
  %229 = vperm.xlu0 %228, %v115
  %v230 = vpop.permute.xlu0 %229
  %233 = vset.pattern.permute.xlu0 0
  %234 = vperm.xlu0 %233, %v116
  %v235 = vpop.permute.xlu0 %234
  %238 = vset.pattern.permute.xlu0 0
  %239 = vperm.xlu0 %238, %v117
  %v240 = vpop.permute.xlu0 %239
  %243 = vset.pattern.permute.xlu0 0
  %244 = vperm.xlu0 %243, %v118
  %v245 = vpop.permute.xlu0 %244
  %248 = vset.pattern.permute.xlu0 0
  %249 = vperm.xlu0 %248, %v119
  %v250 = vpop.permute.xlu0 %249
  %253 = vset.pattern.permute.xlu0 0
  %254 = vperm.xlu0 %253, %v120
  %v255 = vpop.permute.xlu0 %254
  %258 = vset.pattern.permute.xlu0 0
  %259 = vperm.xlu0 %258, %v121
  %v260 = vpop.permute.xlu0 %259
  %263 = vset.pattern.permute.xlu0 0
  %264 = vperm.xlu0 %263, %v122
  %v265 = vpop.permute.xlu0 %264
  %268 = vset.pattern.permute.xlu0 0
  %269 = vperm.xlu0 %268, %v123
  %v270 = vpop.permute.xlu0 %269
  %273 = vset.pattern.permute.xlu0 0
  %274 = vperm.xlu0 %273, %v124
  %v275 = vpop.permute.xlu0 %274
  %278 = vset.pattern.permute.xlu0 0
  %279 = vperm.xlu0 %278, %v125
  %v280 = vpop.permute.xlu0 %279
  %283 = vset.pattern.permute.xlu0 0
  %284 = vperm.xlu0 %283, %v126
  %v285 = vpop.permute.xlu0 %284
  %288 = vset.pattern.permute.xlu0 0
  %289 = vperm.xlu0 %288, %v127
  %v290 = vpop.permute.xlu0 %289
  %293 = vset.pattern.permute.xlu0 0
  %294 = vperm.xlu0 %293, %v128
  %v295 = vpop.permute.xlu0 %294
  %298 = vset.pattern.permute.xlu0 0
  %299 = vperm.xlu0 %298, %v129
  %v300 = vpop.permute.xlu0 %299
  %303 = vset.pattern.permute.xlu0 0
  %304 = vperm.xlu0 %303, %v130
  %v305 = vpop.permute.xlu0 %304
  %308 = vset.pattern.permute.xlu0 0
  %309 = vperm.xlu0 %308, %v131
  %v310 = vpop.permute.xlu0 %309
  %313 = vset.pattern.permute.xlu0 0
  %314 = vperm.xlu0 %313, %v132
  %v315 = vpop.permute.xlu0 %314
  %318 = vset.pattern.permute.xlu0 0
  %319 = vperm.xlu0 %318, %v133
  %v320 = vpop.permute.xlu0 %319
  %323 = vset.pattern.permute.xlu0 0
  %324 = vperm.xlu0 %323, %v134
  %v325 = vpop.permute.xlu0 %324
  %328 = vset.pattern.permute.xlu0 0
  %329 = vperm.xlu0 %328, %v135
  %v330 = vpop.permute.xlu0 %329
  %333 = vset.pattern.permute.xlu0 0
  %334 = vperm.xlu0 %333, %v136
  %v335 = vpop.permute.xlu0 %334
  %338 = vset.pattern.permute.xlu0 0
  %339 = vperm.xlu0 %338, %v137
  %v340 = vpop.permute.xlu0 %339
  %343 = vset.pattern.permute.xlu0 0
  %344 = vperm.xlu0 %343, %v138
  %v345 = vpop.permute.xlu0 %344
  %348 = vset.pattern.permute.xlu0 0
  %349 = vperm.xlu0 %348, %v139
  %v350 = vpop.permute.xlu0 %349
  %353 = vset.pattern.permute.xlu0 0
  %354 = vperm.xlu0 %353, %v140
  %v355 = vpop.permute.xlu0 %354
  %358 = vset.pattern.permute.xlu0 0
  %359 = vperm.xlu0 %358, %v141
  %v360 = vpop.permute.xlu0 %359
  %363 = vset.pattern.permute.xlu0 0
  %364 = vperm.xlu0 %363, %v142
  %v365 = vpop.permute.xlu0 %364
  %368 = vset.pattern.permute.xlu0 0
  %369 = vperm.xlu0 %368, %v143
  %v370 = vpop.permute.xlu0 %369
  %373 = vset.pattern.permute.xlu0 0
  %374 = vperm.xlu0 %373, %v144
  %v375 = vpop.permute.xlu0 %374
  %378 = vset.pattern.permute.xlu0 0
  %379 = vperm.xlu0 %378, %v145
  %v380 = vpop.permute.xlu0 %379
  %383 = vset.pattern.permute.xlu0 0
  %384 = vperm.xlu0 %383, %v146
  %v385 = vpop.permute.xlu0 %384
  %388 = vset.pattern.permute.xlu0 0
  %389 = vperm.xlu0 %388, %v147
  %v390 = vpop.permute.xlu0 %389
  %393 = vset.pattern.permute.xlu0 0
  %394 = vperm.xlu0 %393, %v148
  %v395 = vpop.permute.xlu0 %394
  %398 = vset.pattern.permute.xlu0 0
  %399 = vperm.xlu0 %398, %v149
  %v400 = vpop.permute.xlu0 %399
  %403 = vset.pattern.permute.xlu0 0
  %404 = vperm.xlu0 %403, %v150
  %v405 = vpop.permute.xlu0 %404
  %408 = vset.pattern.permute.xlu0 0
  %409 = vperm.xlu0 %408, %v151
  %v410 = vpop.permute.xlu0 %409
  %413 = vset.pattern.permute.xlu0 0
  %414 = vperm.xlu0 %413, %v152
  %v415 = vpop.permute.xlu0 %414
  %418 = vset.pattern.permute.xlu0 0
  %419 = vperm.xlu0 %418, %v153
  %v420 = vpop.permute.xlu0 %419
  %423 = vset.pattern.permute.xlu0 0
  %424 = vperm.xlu0 %423, %v154
  %v425 = vpop.permute.xlu0 %424
  %428 = vset.pattern.permute.xlu0 0
  %429 = vperm.xlu0 %428, %v155
  %v430 = vpop.permute.xlu0 %429
  %433 = vset.pattern.permute.xlu0 0
  %434 = vperm.xlu0 %433, %v156
  %v435 = vpop.permute.xlu0 %434
  %438 = vset.pattern.permute.xlu0 0
  %439 = vperm.xlu0 %438, %v157
  %v440 = vpop.permute.xlu0 %439
  %443 = vset.pattern.permute.xlu0 0
  %444 = vperm.xlu0 %443, %v158
  %v445 = vpop.permute.xlu0 %444
  %448 = vset.pattern.permute.xlu0 0
  %449 = vperm.xlu0 %448, %v159
  %v450 = vpop.permute.xlu0 %449
  %453 = vset.pattern.permute.xlu0 0
  %454 = vperm.xlu0 %453, %v160
  %v455 = vpop.permute.xlu0 %454
  %458 = vset.pattern.permute.xlu0 0
  %459 = vperm.xlu0 %458, %v161
  %v460 = vpop.permute.xlu0 %459
  %463 = vset.pattern.permute.xlu0 0
  %464 = vperm.xlu0 %463, %v162
  %v465 = vpop.permute.xlu0 %464
  %468 = vset.pattern.permute.xlu0 0
  %469 = vperm.xlu0 %468, %v163
  %v470 = vpop.permute.xlu0 %469
  %473 = vset.pattern.permute.xlu0 0
  %474 = vperm.xlu0 %473, %v164
  %v475 = vpop.permute.xlu0 %474
  %478 = vset.pattern.permute.xlu0 0
  %479 = vperm.xlu0 %478, %v165
  %v480 = vpop.permute.xlu0 %479
  %483 = vset.pattern.permute.xlu0 0
  %484 = vperm.xlu0 %483, %v166
  %v485 = vpop.permute.xlu0 %484
  %v551 = vunpack.c.l.b16 %v36
  %v552 = vunpack.c.l.b16 %v37
  %v553 = vunpack.c.l.b16 %v38
  %v554 = vunpack.c.l.b16 %v39
  %v555 = vunpack.c.l.b16 %v40
  %v556 = vunpack.c.l.b16 %v41
  %v557 = vunpack.c.l.b16 %v42
  %v558 = vunpack.c.l.b16 %v43
  %v559 = vunpack.c.l.b16 %v44
  %v560 = vunpack.c.l.b16 %v45
  %v561 = vunpack.c.l.b16 %v46
  %v562 = vunpack.c.l.b16 %v47
  %v563 = vunpack.c.l.b16 %v48
  %v564 = vunpack.c.l.b16 %v49
  %v565 = vunpack.c.l.b16 %v50
  %v566 = vunpack.c.l.b16 %v51
  %v567 = vunpack.c.l.b16 %v52
  %v568 = vunpack.c.l.b16 %v53
  %v569 = vunpack.c.l.b16 %v54
  %v570 = vunpack.c.l.b16 %v55
  %v571 = vunpack.c.l.b16 %v56
  %v572 = vunpack.c.l.b16 %v57
  %v573 = vunpack.c.l.b16 %v58
  %v574 = vunpack.c.l.b16 %v59
  %v575 = vunpack.c.l.b16 %v60
  %v576 = vunpack.c.l.b16 %v61
  %v577 = vunpack.c.l.b16 %v62
  %v578 = vunpack.c.l.b16 %v63
  %v579 = vunpack.c.l.b16 %v64
  %v580 = vunpack.c.l.b16 %v65
  %v581 = vunpack.c.l.b16 %v66
  %v582 = vunpack.c.l.b16 %v67
  %v583 = vunpack.c.l.b16 %v68
  %v584 = vunpack.c.l.b16 %v69
  %v585 = vunpack.c.l.b16 %v70
  %v586 = vunpack.c.l.b16 %v71
  %v587 = vunpack.c.l.b16 %v72
  %v588 = vunpack.c.l.b16 %v73
  %v589 = vunpack.c.l.b16 %v74
  %v590 = vunpack.c.l.b16 %v75
  %v591 = vunpack.c.l.b16 %v76
  %v592 = vunpack.c.l.b16 %v77
  %v593 = vunpack.c.l.b16 %v78
  %v594 = vunpack.c.l.b16 %v79
  %v595 = vunpack.c.l.b16 %v80
  %v596 = vunpack.c.l.b16 %v81
  %v597 = vunpack.c.l.b16 %v82
  %v598 = vunpack.c.l.b16 %v83
  %v599 = vunpack.c.l.b16 %v84
  %v600 = vunpack.c.l.b16 %v85
  %v601 = vunpack.c.l.b16 %v86
  %v602 = vunpack.c.l.b16 %v87
  %v603 = vunpack.c.l.b16 %v88
  %v604 = vunpack.c.l.b16 %v89
  %v605 = vunpack.c.l.b16 %v90
  %v606 = vunpack.c.l.b16 %v91
  %v607 = vunpack.c.l.b16 %v92
  %v608 = vunpack.c.l.b16 %v93
  %v609 = vunpack.c.l.b16 %v94
  %v610 = vunpack.c.l.b16 %v95
  %v611 = vunpack.c.l.b16 %v96
  %v612 = vunpack.c.l.b16 %v97
  %v613 = vunpack.c.l.b16 %v98
  %v614 = vunpack.c.l.b16 %v99
  %v615 = vpack.c.b16 %v552, %v551
  %v616 = vpack.c.b16 %v554, %v553
  %v617 = vpack.c.b16 %v556, %v555
  %v618 = vpack.c.b16 %v558, %v557
  %v619 = vpack.c.b16 %v560, %v559
  %v620 = vpack.c.b16 %v562, %v561
  %v621 = vpack.c.b16 %v564, %v563
  %v622 = vpack.c.b16 %v566, %v565
  %v623 = vpack.c.b16 %v568, %v567
  %v624 = vpack.c.b16 %v570, %v569
  %v625 = vpack.c.b16 %v572, %v571
  %v626 = vpack.c.b16 %v574, %v573
  %v627 = vpack.c.b16 %v576, %v575
  %v628 = vpack.c.b16 %v578, %v577
  %v629 = vpack.c.b16 %v580, %v579
  %v630 = vpack.c.b16 %v582, %v581
  %v631 = vpack.c.b16 %v584, %v583
  %v632 = vpack.c.b16 %v586, %v585
  %v633 = vpack.c.b16 %v588, %v587
  %v634 = vpack.c.b16 %v590, %v589
  %v635 = vpack.c.b16 %v592, %v591
  %v636 = vpack.c.b16 %v594, %v593
  %v637 = vpack.c.b16 %v596, %v595
  %v638 = vpack.c.b16 %v598, %v597
  %v639 = vpack.c.b16 %v600, %v599
  %v640 = vpack.c.b16 %v602, %v601
  %v641 = vpack.c.b16 %v604, %v603
  %v642 = vpack.c.b16 %v606, %v605
  %v643 = vpack.c.b16 %v608, %v607
  %v644 = vpack.c.b16 %v610, %v609
  %v645 = vpack.c.b16 %v612, %v611
  %v646 = vpack.c.b16 %v614, %v613
  %v650 = vunpack.c.l.b16 %v100
  %v651 = vunpack.c.l.b16 %v101
  %v652 = vunpack.c.l.b16 %v102
  %v653 = vpack.c.b16 %v651, %v650
  %v654 = vpack.c.b16 %v652, %v652
  %vm656 = vcmask 195584
  %v658 = vsel %vm656, %v615, 0
  %v661 = vsel %vm656, %v616, 0
  %v664 = vsel %vm656, %v617, 0
  %v667 = vsel %vm656, %v618, 0
  %v670 = vsel %vm656, %v619, 0
  %v673 = vsel %vm656, %v620, 0
  %v676 = vsel %vm656, %v621, 0
  %v679 = vsel %vm656, %v622, 0
  %v682 = vsel %vm656, %v623, 0
  %v685 = vsel %vm656, %v624, 0
  %v688 = vsel %vm656, %v625, 0
  %v691 = vsel %vm656, %v626, 0
  %v694 = vsel %vm656, %v627, 0
  %v697 = vsel %vm656, %v628, 0
  %v700 = vsel %vm656, %v629, 0
  %v703 = vsel %vm656, %v630, 0
  %v706 = vsel %vm656, %v631, 0
  %v709 = vsel %vm656, %v632, 0
  %v712 = vsel %vm656, %v633, 0
  %v715 = vsel %vm656, %v634, 0
  %v718 = vsel %vm656, %v635, 0
  %v721 = vsel %vm656, %v636, 0
  %v724 = vsel %vm656, %v637, 0
  %v727 = vsel %vm656, %v638, 0
  %v730 = vsel %vm656, %v639, 0
  %v733 = vsel %vm656, %v640, 0
  %v736 = vsel %vm656, %v641, 0
  %v739 = vsel %vm656, %v642, 0
  %v742 = vsel %vm656, %v643, 0
  %v745 = vsel %vm656, %v644, 0
  %v748 = vsel %vm656, %v645, 0
  %v751 = vsel %vm656, %v646, 0
  %vm753 = vcmask 1043456
  %v755 = vsel %vm753, %v654, 0
  %757 = vmatprep.subr.bf16.mxu0 0
  %758 = vmatpush1.bf16.msra.mxu0 0
  %759 = vmatprep.subr.bf16.mxu0 0
  %760 = vmatpush1.bf16.msra.mxu0 0
  %761 = vmatprep.subr.bf16.mxu0 0
  %762 = vmatpush1.bf16.msra.mxu0 0
  %763 = vmatprep.subr.bf16.mxu0 0
  %764 = vmatpush1.bf16.msra.mxu0 0
  %765 = vmatprep.subr.bf16.mxu0 0
  %766 = vmatpush1.bf16.msra.mxu0 0
  %767 = vmatprep.subr.bf16.mxu0 0
  %768 = vmatpush1.bf16.msra.mxu0 0
  %769 = vmatprep.subr.bf16.mxu0 0
  %770 = vmatpush1.bf16.msra.mxu0 %v755
  %771 = vmatprep.subr.bf16.mxu0 0
  %772 = vmatpush1.bf16.msra.mxu0 %v653
  %773 = vmatprep.subr.bf16.mxu0 0
  %774 = vmatpush2.bf16.msra.mxu0 0
  %775 = vmatprep.subr.bf16.mxu0 0
  %776 = vmatpush2.bf16.msra.mxu0 0
  %777 = vmatprep.subr.bf16.mxu0 0
  %778 = vmatpush2.bf16.msra.mxu0 0
  %779 = vmatprep.subr.bf16.mxu0 0
  %780 = vmatpush2.bf16.msra.mxu0 0
  %781 = vmatprep.subr.bf16.mxu0 0
  %782 = vmatpush2.bf16.msra.mxu0 0
  %783 = vmatprep.subr.bf16.mxu0 0
  %784 = vmatpush2.bf16.msra.mxu0 0
  %785 = vmatprep.subr.bf16.mxu0 0
  %786 = vmatpush2.bf16.msra.mxu0 0
  %787 = vmatprep.subr.bf16.mxu0 0
  %788 = vmatpush2.bf16.msra.mxu0 0
  %789 = vmatprep.mubr.bf16.mxu0 0
  %790 = vmatmul.mubr.bf16.gmra.mxu0 %v658
  %v791 = vpop.f32.mrf.mxu0
  %v792 = vadd.f32 %v170, %v791
  %v793 = vpop.f32.mrf.mxu0
  %v794 = vpop.f32.mrf.mxu0
  %v795 = vadd.f32 %v175, %v794
  %v796 = vpop.f32.mrf.mxu0
  %797 = vmatprep.mubr.bf16.mxu0 0
  %798 = vmatmul.mubr.bf16.gmra.mxu0 %v661
  %v799 = vpop.f32.mrf.mxu0
  %v800 = vadd.f32 %v180, %v799
  %v801 = vpop.f32.mrf.mxu0
  %v802 = vpop.f32.mrf.mxu0
  %v803 = vadd.f32 %v185, %v802
  %v804 = vpop.f32.mrf.mxu0
  %805 = vmatprep.mubr.bf16.mxu0 0
  %806 = vmatmul.mubr.bf16.gmra.mxu0 %v664
  %v807 = vpop.f32.mrf.mxu0
  %v808 = vadd.f32 %v190, %v807
  %v809 = vpop.f32.mrf.mxu0
  %v810 = vpop.f32.mrf.mxu0
  %v811 = vadd.f32 %v195, %v810
  %v812 = vpop.f32.mrf.mxu0
  %813 = vmatprep.mubr.bf16.mxu0 0
  %814 = vmatmul.mubr.bf16.gmra.mxu0 %v667
  %v815 = vpop.f32.mrf.mxu0
  %v816 = vadd.f32 %v200, %v815
  %v817 = vpop.f32.mrf.mxu0
  %v818 = vpop.f32.mrf.mxu0
  %v819 = vadd.f32 %v205, %v818
  %v820 = vpop.f32.mrf.mxu0
  %821 = vmatprep.mubr.bf16.mxu0 0
  %822 = vmatmul.mubr.bf16.gmra.mxu0 %v670
  %v823 = vpop.f32.mrf.mxu0
  %v824 = vadd.f32 %v210, %v823
  %v825 = vpop.f32.mrf.mxu0
  %v826 = vpop.f32.mrf.mxu0
  %v827 = vadd.f32 %v215, %v826
  %v828 = vpop.f32.mrf.mxu0
  %829 = vmatprep.mubr.bf16.mxu0 0
  %830 = vmatmul.mubr.bf16.gmra.mxu0 %v673
  %v831 = vpop.f32.mrf.mxu0
  %v832 = vadd.f32 %v220, %v831
  %v833 = vpop.f32.mrf.mxu0
  %v834 = vpop.f32.mrf.mxu0
  %v835 = vadd.f32 %v225, %v834
  %v836 = vpop.f32.mrf.mxu0
  %837 = vmatprep.mubr.bf16.mxu0 0
  %838 = vmatmul.mubr.bf16.gmra.mxu0 %v676
  %v839 = vpop.f32.mrf.mxu0
  %v840 = vadd.f32 %v230, %v839
  %v841 = vpop.f32.mrf.mxu0
  %v842 = vpop.f32.mrf.mxu0
  %v843 = vadd.f32 %v235, %v842
  %v844 = vpop.f32.mrf.mxu0
  %845 = vmatprep.mubr.bf16.mxu0 0
  %846 = vmatmul.mubr.bf16.gmra.mxu0 %v679
  %v847 = vpop.f32.mrf.mxu0
  %v848 = vadd.f32 %v240, %v847
  %v849 = vpop.f32.mrf.mxu0
  %v850 = vpop.f32.mrf.mxu0
  %v851 = vadd.f32 %v245, %v850
  %v852 = vpop.f32.mrf.mxu0
  %853 = vmatprep.mubr.bf16.mxu0 0
  %854 = vmatmul.mubr.bf16.gmra.mxu0 %v682
  %v855 = vpop.f32.mrf.mxu0
  %v856 = vadd.f32 %v250, %v855
  %v857 = vpop.f32.mrf.mxu0
  %v858 = vpop.f32.mrf.mxu0
  %v859 = vadd.f32 %v255, %v858
  %v860 = vpop.f32.mrf.mxu0
  %861 = vmatprep.mubr.bf16.mxu0 0
  %862 = vmatmul.mubr.bf16.gmra.mxu0 %v685
  %v863 = vpop.f32.mrf.mxu0
  %v864 = vadd.f32 %v260, %v863
  %v865 = vpop.f32.mrf.mxu0
  %v866 = vpop.f32.mrf.mxu0
  %v867 = vadd.f32 %v265, %v866
  %v868 = vpop.f32.mrf.mxu0
  %869 = vmatprep.mubr.bf16.mxu0 0
  %870 = vmatmul.mubr.bf16.gmra.mxu0 %v688
  %v871 = vpop.f32.mrf.mxu0
  %v872 = vadd.f32 %v270, %v871
  %v873 = vpop.f32.mrf.mxu0
  %v874 = vpop.f32.mrf.mxu0
  %v875 = vadd.f32 %v275, %v874
  %v876 = vpop.f32.mrf.mxu0
  %877 = vmatprep.mubr.bf16.mxu0 0
  %878 = vmatmul.mubr.bf16.gmra.mxu0 %v691
  %v879 = vpop.f32.mrf.mxu0
  %v880 = vadd.f32 %v280, %v879
  %v881 = vpop.f32.mrf.mxu0
  %v882 = vpop.f32.mrf.mxu0
  %v883 = vadd.f32 %v285, %v882
  %v884 = vpop.f32.mrf.mxu0
  %885 = vmatprep.mubr.bf16.mxu0 0
  %886 = vmatmul.mubr.bf16.gmra.mxu0 %v694
  %v887 = vpop.f32.mrf.mxu0
  %v888 = vadd.f32 %v290, %v887
  %v889 = vpop.f32.mrf.mxu0
  %v890 = vpop.f32.mrf.mxu0
  %v891 = vadd.f32 %v295, %v890
  %v892 = vpop.f32.mrf.mxu0
  %893 = vmatprep.mubr.bf16.mxu0 0
  %894 = vmatmul.mubr.bf16.gmra.mxu0 %v697
  %v895 = vpop.f32.mrf.mxu0
  %v896 = vadd.f32 %v300, %v895
  %v897 = vpop.f32.mrf.mxu0
  %v898 = vpop.f32.mrf.mxu0
  %v899 = vadd.f32 %v305, %v898
  %v900 = vpop.f32.mrf.mxu0
  %901 = vmatprep.mubr.bf16.mxu0 0
  %902 = vmatmul.mubr.bf16.gmra.mxu0 %v700
  %v903 = vpop.f32.mrf.mxu0
  %v904 = vadd.f32 %v310, %v903
  %v905 = vpop.f32.mrf.mxu0
  %v906 = vpop.f32.mrf.mxu0
  %v907 = vadd.f32 %v315, %v906
  %v908 = vpop.f32.mrf.mxu0
  %909 = vmatprep.mubr.bf16.mxu0 0
  %910 = vmatmul.mubr.bf16.gmra.mxu0 %v703
  %v911 = vpop.f32.mrf.mxu0
  %v912 = vadd.f32 %v320, %v911
  %v913 = vpop.f32.mrf.mxu0
  %v914 = vpop.f32.mrf.mxu0
  %v915 = vadd.f32 %v325, %v914
  %v916 = vpop.f32.mrf.mxu0
  %917 = vmatprep.mubr.bf16.mxu0 0
  %918 = vmatmul.mubr.bf16.gmra.mxu0 %v706
  %v919 = vpop.f32.mrf.mxu0
  %v920 = vadd.f32 %v330, %v919
  %v921 = vpop.f32.mrf.mxu0
  %v922 = vpop.f32.mrf.mxu0
  %v923 = vadd.f32 %v335, %v922
  %v924 = vpop.f32.mrf.mxu0
  %925 = vmatprep.mubr.bf16.mxu0 0
  %926 = vmatmul.mubr.bf16.gmra.mxu0 %v709
  %v927 = vpop.f32.mrf.mxu0
  %v928 = vadd.f32 %v340, %v927
  %v929 = vpop.f32.mrf.mxu0
  %v930 = vpop.f32.mrf.mxu0
  %v931 = vadd.f32 %v345, %v930
  %v932 = vpop.f32.mrf.mxu0
  %933 = vmatprep.mubr.bf16.mxu0 0
  %934 = vmatmul.mubr.bf16.gmra.mxu0 %v712
  %v935 = vpop.f32.mrf.mxu0
  %v936 = vadd.f32 %v350, %v935
  %v937 = vpop.f32.mrf.mxu0
  %v938 = vpop.f32.mrf.mxu0
  %v939 = vadd.f32 %v355, %v938
  %v940 = vpop.f32.mrf.mxu0
  %941 = vmatprep.mubr.bf16.mxu0 0
  %942 = vmatmul.mubr.bf16.gmra.mxu0 %v715
  %v943 = vpop.f32.mrf.mxu0
  %v944 = vadd.f32 %v360, %v943
  %v945 = vpop.f32.mrf.mxu0
  %v946 = vpop.f32.mrf.mxu0
  %v947 = vadd.f32 %v365, %v946
  %v948 = vpop.f32.mrf.mxu0
  %949 = vmatprep.mubr.bf16.mxu0 0
  %950 = vmatmul.mubr.bf16.gmra.mxu0 %v718
  %v951 = vpop.f32.mrf.mxu0
  %v952 = vadd.f32 %v370, %v951
  %v953 = vpop.f32.mrf.mxu0
  %v954 = vpop.f32.mrf.mxu0
  %v955 = vadd.f32 %v375, %v954
  %v956 = vpop.f32.mrf.mxu0
  %957 = vmatprep.mubr.bf16.mxu0 0
  %958 = vmatmul.mubr.bf16.gmra.mxu0 %v721
  %v959 = vpop.f32.mrf.mxu0
  %v960 = vadd.f32 %v380, %v959
  %v961 = vpop.f32.mrf.mxu0
  %v962 = vpop.f32.mrf.mxu0
  %v963 = vadd.f32 %v385, %v962
  %v964 = vpop.f32.mrf.mxu0
  %965 = vmatprep.mubr.bf16.mxu0 0
  %966 = vmatmul.mubr.bf16.gmra.mxu0 %v724
  %v967 = vpop.f32.mrf.mxu0
  %v968 = vadd.f32 %v390, %v967
  %v969 = vpop.f32.mrf.mxu0
  %v970 = vpop.f32.mrf.mxu0
  %v971 = vadd.f32 %v395, %v970
  %v972 = vpop.f32.mrf.mxu0
  %973 = vmatprep.mubr.bf16.mxu0 0
  %974 = vmatmul.mubr.bf16.gmra.mxu0 %v727
  %v975 = vpop.f32.mrf.mxu0
  %v976 = vadd.f32 %v400, %v975
  %v977 = vpop.f32.mrf.mxu0
  %v978 = vpop.f32.mrf.mxu0
  %v979 = vadd.f32 %v405, %v978
  %v980 = vpop.f32.mrf.mxu0
  %981 = vmatprep.mubr.bf16.mxu0 0
  %982 = vmatmul.mubr.bf16.gmra.mxu0 %v730
  %v983 = vpop.f32.mrf.mxu0
  %v984 = vadd.f32 %v410, %v983
  %v985 = vpop.f32.mrf.mxu0
  %v986 = vpop.f32.mrf.mxu0
  %v987 = vadd.f32 %v415, %v986
  %v988 = vpop.f32.mrf.mxu0
  %989 = vmatprep.mubr.bf16.mxu0 0
  %990 = vmatmul.mubr.bf16.gmra.mxu0 %v733
  %v991 = vpop.f32.mrf.mxu0
  %v992 = vadd.f32 %v420, %v991
  %v993 = vpop.f32.mrf.mxu0
  %v994 = vpop.f32.mrf.mxu0
  %v995 = vadd.f32 %v425, %v994
  %v996 = vpop.f32.mrf.mxu0
  %997 = vmatprep.mubr.bf16.mxu0 0
  %998 = vmatmul.mubr.bf16.gmra.mxu0 %v736
  %v999 = vpop.f32.mrf.mxu0
  %v1000 = vadd.f32 %v430, %v999
  %v1001 = vpop.f32.mrf.mxu0
  %v1002 = vpop.f32.mrf.mxu0
  %v1003 = vadd.f32 %v435, %v1002
  %v1004 = vpop.f32.mrf.mxu0
  %1005 = vmatprep.mubr.bf16.mxu0 0
  %1006 = vmatmul.mubr.bf16.gmra.mxu0 %v739
  %v1007 = vpop.f32.mrf.mxu0
  %v1008 = vadd.f32 %v440, %v1007
  %v1009 = vpop.f32.mrf.mxu0
  %v1010 = vpop.f32.mrf.mxu0
  %v1011 = vadd.f32 %v445, %v1010
  %v1012 = vpop.f32.mrf.mxu0
  %1013 = vmatprep.mubr.bf16.mxu0 0
  %1014 = vmatmul.mubr.bf16.gmra.mxu0 %v742
  %v1015 = vpop.f32.mrf.mxu0
  %v1016 = vadd.f32 %v450, %v1015
  %v1017 = vpop.f32.mrf.mxu0
  %v1018 = vpop.f32.mrf.mxu0
  %v1019 = vadd.f32 %v455, %v1018
  %v1020 = vpop.f32.mrf.mxu0
  %1021 = vmatprep.mubr.bf16.mxu0 0
  %1022 = vmatmul.mubr.bf16.gmra.mxu0 %v745
  %v1023 = vpop.f32.mrf.mxu0
  %v1024 = vadd.f32 %v460, %v1023
  %v1025 = vpop.f32.mrf.mxu0
  %v1026 = vpop.f32.mrf.mxu0
  %v1027 = vadd.f32 %v465, %v1026
  %v1028 = vpop.f32.mrf.mxu0
  %1029 = vmatprep.mubr.bf16.mxu0 0
  %1030 = vmatmul.mubr.bf16.gmra.mxu0 %v748
  %v1031 = vpop.f32.mrf.mxu0
  %v1032 = vadd.f32 %v470, %v1031
  %v1033 = vpop.f32.mrf.mxu0
  %v1034 = vpop.f32.mrf.mxu0
  %v1035 = vadd.f32 %v475, %v1034
  %v1036 = vpop.f32.mrf.mxu0
  %1037 = vmatprep.mubr.bf16.mxu0 0
  %1038 = vmatmul.mubr.bf16.gmra.mxu0 %v751
  %v1039 = vpop.f32.mrf.mxu0
  %v1040 = vadd.f32 %v480, %v1039
  %v1041 = vpop.f32.mrf.mxu0
  %v1042 = vpop.f32.mrf.mxu0
  %v1043 = vadd.f32 %v485, %v1042
  %v1044 = vpop.f32.mrf.mxu0
  %1045 = vdwg.mxu0
  %v1046 = vmax.f32 %v792, 0.0
  %v1047 = vmax.f32 %v795, 0.0
  %v1048 = vmax.f32 %v800, 0.0
  %v1049 = vmax.f32 %v803, 0.0
  %v1050 = vmax.f32 %v808, 0.0
  %v1051 = vmax.f32 %v811, 0.0
  %v1052 = vmax.f32 %v816, 0.0
  %v1053 = vmax.f32 %v819, 0.0
  %v1054 = vmax.f32 %v824, 0.0
  %v1055 = vmax.f32 %v827, 0.0
  %v1056 = vmax.f32 %v832, 0.0
  %v1057 = vmax.f32 %v835, 0.0
  %v1058 = vmax.f32 %v840, 0.0
  %v1059 = vmax.f32 %v843, 0.0
  %v1060 = vmax.f32 %v848, 0.0
  %v1061 = vmax.f32 %v851, 0.0
  %v1062 = vmax.f32 %v856, 0.0
  %v1063 = vmax.f32 %v859, 0.0
  %v1064 = vmax.f32 %v864, 0.0
  %v1065 = vmax.f32 %v867, 0.0
  %v1066 = vmax.f32 %v872, 0.0
  %v1067 = vmax.f32 %v875, 0.0
  %v1068 = vmax.f32 %v880, 0.0
  %v1069 = vmax.f32 %v883, 0.0
  %v1070 = vmax.f32 %v888, 0.0
  %v1071 = vmax.f32 %v891, 0.0
  %v1072 = vmax.f32 %v896, 0.0
  %v1073 = vmax.f32 %v899, 0.0
  %v1074 = vmax.f32 %v904, 0.0
  %v1075 = vmax.f32 %v907, 0.0
  %v1076 = vmax.f32 %v912, 0.0
  %v1077 = vmax.f32 %v915, 0.0
  %v1078 = vmax.f32 %v920, 0.0
  %v1079 = vmax.f32 %v923, 0.0
  %v1080 = vmax.f32 %v928, 0.0
  %v1081 = vmax.f32 %v931, 0.0
  %v1082 = vmax.f32 %v936, 0.0
  %v1083 = vmax.f32 %v939, 0.0
  %v1084 = vmax.f32 %v944, 0.0
  %v1085 = vmax.f32 %v947, 0.0
  %v1086 = vmax.f32 %v952, 0.0
  %v1087 = vmax.f32 %v955, 0.0
  %v1088 = vmax.f32 %v960, 0.0
  %v1089 = vmax.f32 %v963, 0.0
  %v1090 = vmax.f32 %v968, 0.0
  %v1091 = vmax.f32 %v971, 0.0
  %v1092 = vmax.f32 %v976, 0.0
  %v1093 = vmax.f32 %v979, 0.0
  %v1094 = vmax.f32 %v984, 0.0
  %v1095 = vmax.f32 %v987, 0.0
  %v1096 = vmax.f32 %v992, 0.0
  %v1097 = vmax.f32 %v995, 0.0
  %v1098 = vmax.f32 %v1000, 0.0
  %v1099 = vmax.f32 %v1003, 0.0
  %v1100 = vmax.f32 %v1008, 0.0
  %v1101 = vmax.f32 %v1011, 0.0
  %v1102 = vmax.f32 %v1016, 0.0
  %v1103 = vmax.f32 %v1019, 0.0
  %v1104 = vmax.f32 %v1024, 0.0
  %v1105 = vmax.f32 %v1027, 0.0
  %v1106 = vmax.f32 %v1032, 0.0
  %v1107 = vmax.f32 %v1035, 0.0
  %v1108 = vmax.f32 %v1040, 0.0
  %v1109 = vmax.f32 %v1043, 0.0
  %v1110 = vpack.c.bf16 %v1047, %v1046
  %v1111 = vpack.c.bf16 %v1049, %v1048
  %v1112 = vpack.c.bf16 %v1051, %v1050
  %v1113 = vpack.c.bf16 %v1053, %v1052
  %v1114 = vpack.c.bf16 %v1055, %v1054
  %v1115 = vpack.c.bf16 %v1057, %v1056
  %v1116 = vpack.c.bf16 %v1059, %v1058
  %v1117 = vpack.c.bf16 %v1061, %v1060
  %v1118 = vpack.c.bf16 %v1063, %v1062
  %v1119 = vpack.c.bf16 %v1065, %v1064
  %v1120 = vpack.c.bf16 %v1067, %v1066
  %v1121 = vpack.c.bf16 %v1069, %v1068
  %v1122 = vpack.c.bf16 %v1071, %v1070
  %v1123 = vpack.c.bf16 %v1073, %v1072
  %v1124 = vpack.c.bf16 %v1075, %v1074
  %v1125 = vpack.c.bf16 %v1077, %v1076
  %v1126 = vpack.c.bf16 %v1079, %v1078
  %v1127 = vpack.c.bf16 %v1081, %v1080
  %v1128 = vpack.c.bf16 %v1083, %v1082
  %v1129 = vpack.c.bf16 %v1085, %v1084
  %v1130 = vpack.c.bf16 %v1087, %v1086
  %v1131 = vpack.c.bf16 %v1089, %v1088
  %v1132 = vpack.c.bf16 %v1091, %v1090
  %v1133 = vpack.c.bf16 %v1093, %v1092
  %v1134 = vpack.c.bf16 %v1095, %v1094
  %v1135 = vpack.c.bf16 %v1097, %v1096
  %v1136 = vpack.c.bf16 %v1099, %v1098
  %v1137 = vpack.c.bf16 %v1101, %v1100
  %v1138 = vpack.c.bf16 %v1103, %v1102
  %v1139 = vpack.c.bf16 %v1105, %v1104
  %v1140 = vpack.c.bf16 %v1107, %v1106
  %v1141 = vpack.c.bf16 %v1109, %v1108
  %v1142 = vld [vmem:[%s3] sm:$0xff]
  %v1143 = vld [vmem:[%s3 + $0x8] sm:$0xff]
  %v1144 = vld [vmem:[%s3 + $0x10] sm:$0xff]
  %v1145 = vld [vmem:[%s3 + $0x18] sm:$0xff]
  %v1146 = vld [vmem:[%s3 + $0x20] sm:$0xff]
  %v1147 = vld [vmem:[%s3 + $0x28] sm:$0xff]
  %v1148 = vld [vmem:[%s3 + $0x30] sm:$0xff]
  %v1149 = vld [vmem:[%s3 + $0x38] sm:$0xff]
  %v1150 = vld [vmem:[%s3 + $0x40] sm:$0xff]
  %v1151 = vld [vmem:[%s3 + $0x48] sm:$0xff]
  %v1152 = vld [vmem:[%s3 + $0x50] sm:$0xff]
  %v1153 = vld [vmem:[%s3 + $0x58] sm:$0xff]
  %v1154 = vld [vmem:[%s3 + $0x60] sm:$0xff]
  %v1155 = vld [vmem:[%s3 + $0x68] sm:$0xff]
  %v1156 = vld [vmem:[%s3 + $0x70] sm:$0xff]
  %v1157 = vld [vmem:[%s3 + $0x78] sm:$0xff]
  %v1158 = vld [vmem:[%s3 + $0x80] sm:$0xff]
  %v1159 = vld [vmem:[%s3 + $0x88] sm:$0xff]
  %v1160 = vld [vmem:[%s3 + $0x90] sm:$0xff]
  %v1161 = vld [vmem:[%s3 + $0x98] sm:$0xff]
  %v1162 = vld [vmem:[%s3 + $0xa0] sm:$0xff]
  %v1163 = vld [vmem:[%s3 + $0xa8] sm:$0xff]
  %v1164 = vld [vmem:[%s3 + $0xb0] sm:$0xff]
  %v1165 = vld [vmem:[%s3 + $0xb8] sm:$0xff]
  %v1166 = vld [vmem:[%s3 + $0xc0] sm:$0xff]
  %v1167 = vld [vmem:[%s3 + $0xc8] sm:$0xff]
  %v1168 = vld [vmem:[%s3 + $0xd0] sm:$0xff]
  %v1169 = vld [vmem:[%s3 + $0xd8] sm:$0xff]
  %v1170 = vld [vmem:[%s3 + $0xe0] sm:$0xff]
  %v1171 = vld [vmem:[%s3 + $0xe8] sm:$0xff]
  %v1172 = vld [vmem:[%s3 + $0xf0] sm:$0xff]
  %v1173 = vld [vmem:[%s3 + $0xf8] sm:$0xff]
  %v1174 = vld [vmem:[%s4] sm:$0xff]
  %v1175 = vld [vmem:[%s4 + $0x8] sm:$0xff]
  %v1176 = vld [vmem:[%s4 + $0x10] sm:$0xff]
  %v1177 = vld [vmem:[%s4 + $0x18] sm:$0xff]
  %v1178 = vld [vmem:[%s4 + $0x20] sm:$0xff]
  %v1179 = vld [vmem:[%s4 + $0x28] sm:$0xff]
  %v1180 = vld [vmem:[%s4 + $0x30] sm:$0xff]
  %v1181 = vld [vmem:[%s4 + $0x38] sm:$0xff]
  %v1182 = vld [vmem:[%s4 + $0x40] sm:$0xff]
  %v1183 = vld [vmem:[%s4 + $0x48] sm:$0xff]
  %v1184 = vld [vmem:[%s4 + $0x50] sm:$0xff]
  %v1185 = vld [vmem:[%s4 + $0x58] sm:$0xff]
  %v1186 = vld [vmem:[%s4 + $0x60] sm:$0xff]
  %v1187 = vld [vmem:[%s4 + $0x68] sm:$0xff]
  %v1188 = vld [vmem:[%s4 + $0x70] sm:$0xff]
  %v1189 = vld [vmem:[%s4 + $0x78] sm:$0xff]
  %v1190 = vld [vmem:[%s4 + $0x80] sm:$0xff]
  %v1191 = vld [vmem:[%s4 + $0x88] sm:$0xff]
  %v1192 = vld [vmem:[%s4 + $0x90] sm:$0xff]
  %v1193 = vld [vmem:[%s4 + $0x98] sm:$0xff]
  %v1194 = vld [vmem:[%s4 + $0xa0] sm:$0xff]
  %v1195 = vld [vmem:[%s4 + $0xa8] sm:$0xff]
  %v1196 = vld [vmem:[%s4 + $0xb0] sm:$0xff]
  %v1197 = vld [vmem:[%s4 + $0xb8] sm:$0xff]
  %v1198 = vld [vmem:[%s4 + $0xc0] sm:$0xff]
  %v1199 = vld [vmem:[%s4 + $0xc8] sm:$0xff]
  %v1200 = vld [vmem:[%s4 + $0xd0] sm:$0xff]
  %v1201 = vld [vmem:[%s4 + $0xd8] sm:$0xff]
  %v1202 = vld [vmem:[%s4 + $0xe0] sm:$0xff]
  %v1203 = vld [vmem:[%s4 + $0xe8] sm:$0xff]
  %v1204 = vld [vmem:[%s4 + $0xf0] sm:$0xff]
  %v1205 = vld [vmem:[%s4 + $0xf8] sm:$0xff]
  %1207 = vset.pattern.permute.xlu0 0
  %1208 = vperm.xlu0 %1207, %v1174
  %v1209 = vpop.permute.xlu0 %1208
  %1212 = vset.pattern.permute.xlu0 0
  %1213 = vperm.xlu0 %1212, %v1175
  %v1214 = vpop.permute.xlu0 %1213
  %1217 = vset.pattern.permute.xlu0 0
  %1218 = vperm.xlu0 %1217, %v1176
  %v1219 = vpop.permute.xlu0 %1218
  %1222 = vset.pattern.permute.xlu0 0
  %1223 = vperm.xlu0 %1222, %v1177
  %v1224 = vpop.permute.xlu0 %1223
  %1227 = vset.pattern.permute.xlu0 0
  %1228 = vperm.xlu0 %1227, %v1178
  %v1229 = vpop.permute.xlu0 %1228
  %1232 = vset.pattern.permute.xlu0 0
  %1233 = vperm.xlu0 %1232, %v1179
  %v1234 = vpop.permute.xlu0 %1233
  %1237 = vset.pattern.permute.xlu0 0
  %1238 = vperm.xlu0 %1237, %v1180
  %v1239 = vpop.permute.xlu0 %1238
  %1242 = vset.pattern.permute.xlu0 0
  %1243 = vperm.xlu0 %1242, %v1181
  %v1244 = vpop.permute.xlu0 %1243
  %1247 = vset.pattern.permute.xlu0 0
  %1248 = vperm.xlu0 %1247, %v1182
  %v1249 = vpop.permute.xlu0 %1248
  %1252 = vset.pattern.permute.xlu0 0
  %1253 = vperm.xlu0 %1252, %v1183
  %v1254 = vpop.permute.xlu0 %1253
  %1257 = vset.pattern.permute.xlu0 0
  %1258 = vperm.xlu0 %1257, %v1184
  %v1259 = vpop.permute.xlu0 %1258
  %1262 = vset.pattern.permute.xlu0 0
  %1263 = vperm.xlu0 %1262, %v1185
  %v1264 = vpop.permute.xlu0 %1263
  %1267 = vset.pattern.permute.xlu0 0
  %1268 = vperm.xlu0 %1267, %v1186
  %v1269 = vpop.permute.xlu0 %1268
  %1272 = vset.pattern.permute.xlu0 0
  %1273 = vperm.xlu0 %1272, %v1187
  %v1274 = vpop.permute.xlu0 %1273
  %1277 = vset.pattern.permute.xlu0 0
  %1278 = vperm.xlu0 %1277, %v1188
  %v1279 = vpop.permute.xlu0 %1278
  %1282 = vset.pattern.permute.xlu0 0
  %1283 = vperm.xlu0 %1282, %v1189
  %v1284 = vpop.permute.xlu0 %1283
  %1287 = vset.pattern.permute.xlu0 0
  %1288 = vperm.xlu0 %1287, %v1190
  %v1289 = vpop.permute.xlu0 %1288
  %1292 = vset.pattern.permute.xlu0 0
  %1293 = vperm.xlu0 %1292, %v1191
  %v1294 = vpop.permute.xlu0 %1293
  %1297 = vset.pattern.permute.xlu0 0
  %1298 = vperm.xlu0 %1297, %v1192
  %v1299 = vpop.permute.xlu0 %1298
  %1302 = vset.pattern.permute.xlu0 0
  %1303 = vperm.xlu0 %1302, %v1193
  %v1304 = vpop.permute.xlu0 %1303
  %1307 = vset.pattern.permute.xlu0 0
  %1308 = vperm.xlu0 %1307, %v1194
  %v1309 = vpop.permute.xlu0 %1308
  %1312 = vset.pattern.permute.xlu0 0
  %1313 = vperm.xlu0 %1312, %v1195
  %v1314 = vpop.permute.xlu0 %1313
  %1317 = vset.pattern.permute.xlu0 0
  %1318 = vperm.xlu0 %1317, %v1196
  %v1319 = vpop.permute.xlu0 %1318
  %1322 = vset.pattern.permute.xlu0 0
  %1323 = vperm.xlu0 %1322, %v1197
  %v1324 = vpop.permute.xlu0 %1323
  %1327 = vset.pattern.permute.xlu0 0
  %1328 = vperm.xlu0 %1327, %v1198
  %v1329 = vpop.permute.xlu0 %1328
  %1332 = vset.pattern.permute.xlu0 0
  %1333 = vperm.xlu0 %1332, %v1199
  %v1334 = vpop.permute.xlu0 %1333
  %1337 = vset.pattern.permute.xlu0 0
  %1338 = vperm.xlu0 %1337, %v1200
  %v1339 = vpop.permute.xlu0 %1338
  %1342 = vset.pattern.permute.xlu0 0
  %1343 = vperm.xlu0 %1342, %v1201
  %v1344 = vpop.permute.xlu0 %1343
  %1347 = vset.pattern.permute.xlu0 0
  %1348 = vperm.xlu0 %1347, %v1202
  %v1349 = vpop.permute.xlu0 %1348
  %1352 = vset.pattern.permute.xlu0 0
  %1353 = vperm.xlu0 %1352, %v1203
  %v1354 = vpop.permute.xlu0 %1353
  %1357 = vset.pattern.permute.xlu0 0
  %1358 = vperm.xlu0 %1357, %v1204
  %v1359 = vpop.permute.xlu0 %1358
  %1362 = vset.pattern.permute.xlu0 0
  %1363 = vperm.xlu0 %1362, %v1205
  %v1364 = vpop.permute.xlu0 %1363
  %v1398 = vunpack.c.l.b16 %v1142
  %v1399 = vunpack.c.h.b16 %v1142
  %v1400 = vunpack.c.l.b16 %v1143
  %v1401 = vunpack.c.h.b16 %v1143
  %v1402 = vunpack.c.l.b16 %v1144
  %v1403 = vunpack.c.h.b16 %v1144
  %v1404 = vunpack.c.l.b16 %v1145
  %v1405 = vunpack.c.h.b16 %v1145
  %v1406 = vunpack.c.l.b16 %v1146
  %v1407 = vunpack.c.h.b16 %v1146
  %v1408 = vunpack.c.l.b16 %v1147
  %v1409 = vunpack.c.h.b16 %v1147
  %v1410 = vunpack.c.l.b16 %v1148
  %v1411 = vunpack.c.h.b16 %v1148
  %v1412 = vunpack.c.l.b16 %v1149
  %v1413 = vunpack.c.h.b16 %v1149
  %v1414 = vunpack.c.l.b16 %v1150
  %v1415 = vunpack.c.h.b16 %v1150
  %v1416 = vunpack.c.l.b16 %v1151
  %v1417 = vunpack.c.h.b16 %v1151
  %v1418 = vunpack.c.l.b16 %v1152
  %v1419 = vunpack.c.h.b16 %v1152
  %v1420 = vunpack.c.l.b16 %v1153
  %v1421 = vunpack.c.h.b16 %v1153
  %v1422 = vunpack.c.l.b16 %v1154
  %v1423 = vunpack.c.h.b16 %v1154
  %v1424 = vunpack.c.l.b16 %v1155
  %v1425 = vunpack.c.h.b16 %v1155
  %v1426 = vunpack.c.l.b16 %v1156
  %v1427 = vunpack.c.h.b16 %v1156
  %v1428 = vunpack.c.l.b16 %v1157
  %v1429 = vunpack.c.h.b16 %v1157
  %v1430 = vunpack.c.l.b16 %v1158
  %v1431 = vunpack.c.h.b16 %v1158
  %v1432 = vunpack.c.l.b16 %v1159
  %v1433 = vunpack.c.h.b16 %v1159
  %v1434 = vunpack.c.l.b16 %v1160
  %v1435 = vunpack.c.h.b16 %v1160
  %v1436 = vunpack.c.l.b16 %v1161
  %v1437 = vunpack.c.h.b16 %v1161
  %v1438 = vunpack.c.l.b16 %v1162
  %v1439 = vunpack.c.h.b16 %v1162
  %v1440 = vunpack.c.l.b16 %v1163
  %v1441 = vunpack.c.h.b16 %v1163
  %v1442 = vunpack.c.l.b16 %v1164
  %v1443 = vunpack.c.h.b16 %v1164
  %v1444 = vunpack.c.l.b16 %v1165
  %v1445 = vunpack.c.h.b16 %v1165
  %v1446 = vunpack.c.l.b16 %v1166
  %v1447 = vunpack.c.h.b16 %v1166
  %v1448 = vunpack.c.l.b16 %v1167
  %v1449 = vunpack.c.h.b16 %v1167
  %v1450 = vunpack.c.l.b16 %v1168
  %v1451 = vunpack.c.h.b16 %v1168
  %v1452 = vunpack.c.l.b16 %v1169
  %v1453 = vunpack.c.h.b16 %v1169
  %v1454 = vunpack.c.l.b16 %v1170
  %v1455 = vunpack.c.h.b16 %v1170
  %v1456 = vunpack.c.l.b16 %v1171
  %v1457 = vunpack.c.h.b16 %v1171
  %v1458 = vunpack.c.l.b16 %v1172
  %v1459 = vunpack.c.h.b16 %v1172
  %v1460 = vunpack.c.l.b16 %v1173
  %v1461 = vunpack.c.h.b16 %v1173
  %v1462 = vpack.c.b16 %v1400, %v1398
  %v1463 = vpack.c.b16 %v1401, %v1399
  %v1464 = vpack.c.b16 %v1404, %v1402
  %v1465 = vpack.c.b16 %v1405, %v1403
  %v1466 = vpack.c.b16 %v1408, %v1406
  %v1467 = vpack.c.b16 %v1409, %v1407
  %v1468 = vpack.c.b16 %v1412, %v1410
  %v1469 = vpack.c.b16 %v1413, %v1411
  %v1470 = vpack.c.b16 %v1416, %v1414
  %v1471 = vpack.c.b16 %v1417, %v1415
  %v1472 = vpack.c.b16 %v1420, %v1418
  %v1473 = vpack.c.b16 %v1421, %v1419
  %v1474 = vpack.c.b16 %v1424, %v1422
  %v1475 = vpack.c.b16 %v1425, %v1423
  %v1476 = vpack.c.b16 %v1428, %v1426
  %v1477 = vpack.c.b16 %v1429, %v1427
  %v1478 = vpack.c.b16 %v1432, %v1430
  %v1479 = vpack.c.b16 %v1433, %v1431
  %v1480 = vpack.c.b16 %v1436, %v1434
  %v1481 = vpack.c.b16 %v1437, %v1435
  %v1482 = vpack.c.b16 %v1440, %v1438
  %v1483 = vpack.c.b16 %v1441, %v1439
  %v1484 = vpack.c.b16 %v1444, %v1442
  %v1485 = vpack.c.b16 %v1445, %v1443
  %v1486 = vpack.c.b16 %v1448, %v1446
  %v1487 = vpack.c.b16 %v1449, %v1447
  %v1488 = vpack.c.b16 %v1452, %v1450
  %v1489 = vpack.c.b16 %v1453, %v1451
  %v1490 = vpack.c.b16 %v1456, %v1454
  %v1491 = vpack.c.b16 %v1457, %v1455
  %v1492 = vpack.c.b16 %v1460, %v1458
  %v1493 = vpack.c.b16 %v1461, %v1459
  %1526 = vmatprep.subr.bf16.mxu0 0
  %1527 = vmatpush1.bf16.msra.mxu0 %v1117
  %1528 = vmatprep.subr.bf16.mxu0 0
  %1529 = vmatpush1.bf16.msra.mxu0 %v1116
  %1530 = vmatprep.subr.bf16.mxu0 0
  %1531 = vmatpush1.bf16.msra.mxu0 %v1115
  %1532 = vmatprep.subr.bf16.mxu0 0
  %1533 = vmatpush1.bf16.msra.mxu0 %v1114
  %1534 = vmatprep.subr.bf16.mxu0 0
  %1535 = vmatpush1.bf16.msra.mxu0 %v1113
  %1536 = vmatprep.subr.bf16.mxu0 0
  %1537 = vmatpush1.bf16.msra.mxu0 %v1112
  %1538 = vmatprep.subr.bf16.mxu0 0
  %1539 = vmatpush1.bf16.msra.mxu0 %v1111
  %1540 = vmatprep.subr.bf16.mxu0 0
  %1541 = vmatpush1.bf16.msra.mxu0 %v1110
  %1542 = vmatprep.subr.bf16.mxu0 0
  %1543 = vmatpush2.bf16.msra.mxu0 %v1125
  %1544 = vmatprep.subr.bf16.mxu0 0
  %1545 = vmatpush2.bf16.msra.mxu0 %v1124
  %1546 = vmatprep.subr.bf16.mxu0 0
  %1547 = vmatpush2.bf16.msra.mxu0 %v1123
  %1548 = vmatprep.subr.bf16.mxu0 0
  %1549 = vmatpush2.bf16.msra.mxu0 %v1122
  %1550 = vmatprep.subr.bf16.mxu0 0
  %1551 = vmatpush2.bf16.msra.mxu0 %v1121
  %1552 = vmatprep.subr.bf16.mxu0 0
  %1553 = vmatpush2.bf16.msra.mxu0 %v1120
  %1554 = vmatprep.subr.bf16.mxu0 0
  %1555 = vmatpush2.bf16.msra.mxu0 %v1119
  %1556 = vmatprep.subr.bf16.mxu0 0
  %1557 = vmatpush2.bf16.msra.mxu0 %v1118
  %1558 = vmatprep.mubr.bf16.mxu0 %v1463
  %1559 = vmatmul.mubr.bf16.gmra.mxu0 %v1462
  %v1560 = vpop.f32.mrf.mxu0
  %v1561 = vadd.f32 %v1209, %v1560
  %v1562 = vpop.f32.mrf.mxu0
  %v1563 = vpop.f32.mrf.mxu0
  %v1564 = vadd.f32 %v1214, %v1563
  %v1565 = vpop.f32.mrf.mxu0
  %1566 = vmatprep.mubr.bf16.mxu0 %v1465
  %1567 = vmatmul.mubr.bf16.gmra.mxu0 %v1464
  %v1568 = vpop.f32.mrf.mxu0
  %v1569 = vadd.f32 %v1219, %v1568
  %v1570 = vpop.f32.mrf.mxu0
  %v1571 = vpop.f32.mrf.mxu0
  %v1572 = vadd.f32 %v1224, %v1571
  %v1573 = vpop.f32.mrf.mxu0
  %1574 = vmatprep.mubr.bf16.mxu0 %v1467
  %1575 = vmatmul.mubr.bf16.gmra.mxu0 %v1466
  %v1576 = vpop.f32.mrf.mxu0
  %v1577 = vadd.f32 %v1229, %v1576
  %v1578 = vpop.f32.mrf.mxu0
  %v1579 = vpop.f32.mrf.mxu0
  %v1580 = vadd.f32 %v1234, %v1579
  %v1581 = vpop.f32.mrf.mxu0
  %1582 = vmatprep.mubr.bf16.mxu0 %v1469
  %1583 = vmatmul.mubr.bf16.gmra.mxu0 %v1468
  %v1584 = vpop.f32.mrf.mxu0
  %v1585 = vadd.f32 %v1239, %v1584
  %v1586 = vpop.f32.mrf.mxu0
  %v1587 = vpop.f32.mrf.mxu0
  %v1588 = vadd.f32 %v1244, %v1587
  %v1589 = vpop.f32.mrf.mxu0
  %1590 = vmatprep.mubr.bf16.mxu0 %v1471
  %1591 = vmatmul.mubr.bf16.gmra.mxu0 %v1470
  %v1592 = vpop.f32.mrf.mxu0
  %v1593 = vadd.f32 %v1249, %v1592
  %v1594 = vpop.f32.mrf.mxu0
  %v1595 = vpop.f32.mrf.mxu0
  %v1596 = vadd.f32 %v1254, %v1595
  %v1597 = vpop.f32.mrf.mxu0
  %1598 = vmatprep.mubr.bf16.mxu0 %v1473
  %1599 = vmatmul.mubr.bf16.gmra.mxu0 %v1472
  %v1600 = vpop.f32.mrf.mxu0
  %v1601 = vadd.f32 %v1259, %v1600
  %v1602 = vpop.f32.mrf.mxu0
  %v1603 = vpop.f32.mrf.mxu0
  %v1604 = vadd.f32 %v1264, %v1603
  %v1605 = vpop.f32.mrf.mxu0
  %1606 = vmatprep.mubr.bf16.mxu0 %v1475
  %1607 = vmatmul.mubr.bf16.gmra.mxu0 %v1474
  %v1608 = vpop.f32.mrf.mxu0
  %v1609 = vadd.f32 %v1269, %v1608
  %v1610 = vpop.f32.mrf.mxu0
  %v1611 = vpop.f32.mrf.mxu0
  %v1612 = vadd.f32 %v1274, %v1611
  %v1613 = vpop.f32.mrf.mxu0
  %1614 = vmatprep.mubr.bf16.mxu0 %v1477
  %1615 = vmatmul.mubr.bf16.gmra.mxu0 %v1476
  %v1616 = vpop.f32.mrf.mxu0
  %v1617 = vadd.f32 %v1279, %v1616
  %v1618 = vpop.f32.mrf.mxu0
  %v1619 = vpop.f32.mrf.mxu0
  %v1620 = vadd.f32 %v1284, %v1619
  %v1621 = vpop.f32.mrf.mxu0
  %1622 = vmatprep.mubr.bf16.mxu0 %v1479
  %1623 = vmatmul.mubr.bf16.gmra.mxu0 %v1478
  %v1624 = vpop.f32.mrf.mxu0
  %v1625 = vadd.f32 %v1289, %v1624
  %v1626 = vpop.f32.mrf.mxu0
  %v1627 = vpop.f32.mrf.mxu0
  %v1628 = vadd.f32 %v1294, %v1627
  %v1629 = vpop.f32.mrf.mxu0
  %1630 = vmatprep.mubr.bf16.mxu0 %v1481
  %1631 = vmatmul.mubr.bf16.gmra.mxu0 %v1480
  %v1632 = vpop.f32.mrf.mxu0
  %v1633 = vadd.f32 %v1299, %v1632
  %v1634 = vpop.f32.mrf.mxu0
  %v1635 = vpop.f32.mrf.mxu0
  %v1636 = vadd.f32 %v1304, %v1635
  %v1637 = vpop.f32.mrf.mxu0
  %1638 = vmatprep.mubr.bf16.mxu0 %v1483
  %1639 = vmatmul.mubr.bf16.gmra.mxu0 %v1482
  %v1640 = vpop.f32.mrf.mxu0
  %v1641 = vadd.f32 %v1309, %v1640
  %v1642 = vpop.f32.mrf.mxu0
  %v1643 = vpop.f32.mrf.mxu0
  %v1644 = vadd.f32 %v1314, %v1643
  %v1645 = vpop.f32.mrf.mxu0
  %1646 = vmatprep.mubr.bf16.mxu0 %v1485
  %1647 = vmatmul.mubr.bf16.gmra.mxu0 %v1484
  %v1648 = vpop.f32.mrf.mxu0
  %v1649 = vadd.f32 %v1319, %v1648
  %v1650 = vpop.f32.mrf.mxu0
  %v1651 = vpop.f32.mrf.mxu0
  %v1652 = vadd.f32 %v1324, %v1651
  %v1653 = vpop.f32.mrf.mxu0
  %1654 = vmatprep.mubr.bf16.mxu0 %v1487
  %1655 = vmatmul.mubr.bf16.gmra.mxu0 %v1486
  %v1656 = vpop.f32.mrf.mxu0
  %v1657 = vadd.f32 %v1329, %v1656
  %v1658 = vpop.f32.mrf.mxu0
  %v1659 = vpop.f32.mrf.mxu0
  %v1660 = vadd.f32 %v1334, %v1659
  %v1661 = vpop.f32.mrf.mxu0
  %1662 = vmatprep.mubr.bf16.mxu0 %v1489
  %1663 = vmatmul.mubr.bf16.gmra.mxu0 %v1488
  %v1664 = vpop.f32.mrf.mxu0
  %v1665 = vadd.f32 %v1339, %v1664
  %v1666 = vpop.f32.mrf.mxu0
  %v1667 = vpop.f32.mrf.mxu0
  %v1668 = vadd.f32 %v1344, %v1667
  %v1669 = vpop.f32.mrf.mxu0
  %1670 = vmatprep.mubr.bf16.mxu0 %v1491
  %1671 = vmatmul.mubr.bf16.gmra.mxu0 %v1490
  %v1672 = vpop.f32.mrf.mxu0
  %v1673 = vadd.f32 %v1349, %v1672
  %v1674 = vpop.f32.mrf.mxu0
  %v1675 = vpop.f32.mrf.mxu0
  %v1676 = vadd.f32 %v1354, %v1675
  %v1677 = vpop.f32.mrf.mxu0
  %1678 = vmatprep.mubr.bf16.mxu0 %v1493
  %1679 = vmatmul.mubr.bf16.gmra.mxu0 %v1492
  %v1680 = vpop.f32.mrf.mxu0
  %v1681 = vadd.f32 %v1359, %v1680
  %v1682 = vpop.f32.mrf.mxu0
  %v1683 = vpop.f32.mrf.mxu0
  %v1684 = vadd.f32 %v1364, %v1683
  %v1685 = vpop.f32.mrf.mxu0
  %1686 = vdwg.mxu0
  %v1687 = vmax.f32 %v1561, 0.0
  %v1688 = vmax.f32 %v1564, 0.0
  %v1689 = vmax.f32 %v1569, 0.0
  %v1690 = vmax.f32 %v1572, 0.0
  %v1691 = vmax.f32 %v1577, 0.0
  %v1692 = vmax.f32 %v1580, 0.0
  %v1693 = vmax.f32 %v1585, 0.0
  %v1694 = vmax.f32 %v1588, 0.0
  %v1695 = vmax.f32 %v1593, 0.0
  %v1696 = vmax.f32 %v1596, 0.0
  %v1697 = vmax.f32 %v1601, 0.0
  %v1698 = vmax.f32 %v1604, 0.0
  %v1699 = vmax.f32 %v1609, 0.0
  %v1700 = vmax.f32 %v1612, 0.0
  %v1701 = vmax.f32 %v1617, 0.0
  %v1702 = vmax.f32 %v1620, 0.0
  %v1703 = vmax.f32 %v1625, 0.0
  %v1704 = vmax.f32 %v1628, 0.0
  %v1705 = vmax.f32 %v1633, 0.0
  %v1706 = vmax.f32 %v1636, 0.0
  %v1707 = vmax.f32 %v1641, 0.0
  %v1708 = vmax.f32 %v1644, 0.0
  %v1709 = vmax.f32 %v1649, 0.0
  %v1710 = vmax.f32 %v1652, 0.0
  %v1711 = vmax.f32 %v1657, 0.0
  %v1712 = vmax.f32 %v1660, 0.0
  %v1713 = vmax.f32 %v1665, 0.0
  %v1714 = vmax.f32 %v1668, 0.0
  %v1715 = vmax.f32 %v1673, 0.0
  %v1716 = vmax.f32 %v1676, 0.0
  %v1717 = vmax.f32 %v1681, 0.0
  %v1718 = vmax.f32 %v1684, 0.0
  %v1719 = vld [vmem:[%s5] sm:$0xff]
  %v1720 = vld [vmem:[%s5 + $0x8] sm:$0xff]
  %v1721 = vld [vmem:[%s5 + $0x10] sm:$0xff]
  %v1722 = vld [vmem:[%s5 + $0x18] sm:$0xff]
  %v1723 = vld [vmem:[%s5 + $0x20] sm:$0xff]
  %v1724 = vld [vmem:[%s5 + $0x28] sm:$0xff]
  %v1725 = vld [vmem:[%s5 + $0x30] sm:$0xff]
  %v1726 = vld [vmem:[%s5 + $0x38] sm:$0xff]
  %v1727 = vld [vmem:[%s5 + $0x40] sm:$0xff]
  %v1728 = vld [vmem:[%s5 + $0x48] sm:$0xff]
  %v1729 = vld [vmem:[%s5 + $0x50] sm:$0xff]
  %v1730 = vld [vmem:[%s5 + $0x58] sm:$0xff]
  %v1731 = vld [vmem:[%s5 + $0x60] sm:$0xff]
  %v1732 = vld [vmem:[%s5 + $0x68] sm:$0xff]
  %v1733 = vld [vmem:[%s5 + $0x70] sm:$0xff]
  %v1734 = vld [vmem:[%s5 + $0x78] sm:$0xff]
  %v1735 = vld [vmem:[%s5 + $0x80] sm:$0xff]
  %v1736 = vld [vmem:[%s5 + $0x88] sm:$0xff]
  %v1737 = vld [vmem:[%s5 + $0x90] sm:$0xff]
  %v1738 = vld [vmem:[%s5 + $0x98] sm:$0xff]
  %v1739 = vld [vmem:[%s5 + $0xa0] sm:$0xff]
  %v1740 = vld [vmem:[%s5 + $0xa8] sm:$0xff]
  %v1741 = vld [vmem:[%s5 + $0xb0] sm:$0xff]
  %v1742 = vld [vmem:[%s5 + $0xb8] sm:$0xff]
  %v1743 = vld [vmem:[%s5 + $0xc0] sm:$0xff]
  %v1744 = vld [vmem:[%s5 + $0xc8] sm:$0xff]
  %v1745 = vld [vmem:[%s5 + $0xd0] sm:$0xff]
  %v1746 = vld [vmem:[%s5 + $0xd8] sm:$0xff]
  %v1747 = vld [vmem:[%s5 + $0xe0] sm:$0xff]
  %v1748 = vld [vmem:[%s5 + $0xe8] sm:$0xff]
  %v1749 = vld [vmem:[%s5 + $0xf0] sm:$0xff]
  %v1750 = vld [vmem:[%s5 + $0xf8] sm:$0xff]
  %v1751 = vld [vmem:[%s6] sm:$0xff]
  %v1752 = vld [vmem:[%s6 + $0x8] sm:$0xff]
  %v1753 = vld [vmem:[%s6 + $0x10] sm:$0xff]
  %v1754 = vld [vmem:[%s6 + $0x18] sm:$0xff]
  %v1755 = vld [vmem:[%s6 + $0x20] sm:$0xff]
  %v1756 = vld [vmem:[%s6 + $0x28] sm:$0xff]
  %v1757 = vld [vmem:[%s6 + $0x30] sm:$0xff]
  %v1758 = vld [vmem:[%s6 + $0x38] sm:$0xff]
  %v1759 = vld [vmem:[%s6 + $0x40] sm:$0xff]
  %v1760 = vld [vmem:[%s6 + $0x48] sm:$0xff]
  %v1761 = vld [vmem:[%s6 + $0x50] sm:$0xff]
  %v1762 = vld [vmem:[%s6 + $0x58] sm:$0xff]
  %v1763 = vld [vmem:[%s6 + $0x60] sm:$0xff]
  %v1764 = vld [vmem:[%s6 + $0x68] sm:$0xff]
  %v1765 = vld [vmem:[%s6 + $0x70] sm:$0xff]
  %v1766 = vld [vmem:[%s6 + $0x78] sm:$0xff]
  %v1767 = vld [vmem:[%s6 + $0x80] sm:$0xff]
  %v1768 = vld [vmem:[%s6 + $0x88] sm:$0xff]
  %v1769 = vld [vmem:[%s6 + $0x90] sm:$0xff]
  %v1770 = vld [vmem:[%s6 + $0x98] sm:$0xff]
  %v1771 = vld [vmem:[%s6 + $0xa0] sm:$0xff]
  %v1772 = vld [vmem:[%s6 + $0xa8] sm:$0xff]
  %v1773 = vld [vmem:[%s6 + $0xb0] sm:$0xff]
  %v1774 = vld [vmem:[%s6 + $0xb8] sm:$0xff]
  %v1775 = vld [vmem:[%s6 + $0xc0] sm:$0xff]
  %v1776 = vld [vmem:[%s6 + $0xc8] sm:$0xff]
  %v1777 = vld [vmem:[%s6 + $0xd0] sm:$0xff]
  %v1778 = vld [vmem:[%s6 + $0xd8] sm:$0xff]
  %v1779 = vld [vmem:[%s6 + $0xe0] sm:$0xff]
  %v1780 = vld [vmem:[%s6 + $0xe8] sm:$0xff]
  %v1781 = vld [vmem:[%s6 + $0xf0] sm:$0xff]
  %v1782 = vld [vmem:[%s6 + $0xf8] sm:$0xff]
  %1784 = vset.pattern.permute.xlu0 0
  %1785 = vperm.xlu0 %1784, %v1751
  %v1786 = vpop.permute.xlu0 %1785
  %1789 = vset.pattern.permute.xlu0 0
  %1790 = vperm.xlu0 %1789, %v1752
  %v1791 = vpop.permute.xlu0 %1790
  %1794 = vset.pattern.permute.xlu0 0
  %1795 = vperm.xlu0 %1794, %v1753
  %v1796 = vpop.permute.xlu0 %1795
  %1799 = vset.pattern.permute.xlu0 0
  %1800 = vperm.xlu0 %1799, %v1754
  %v1801 = vpop.permute.xlu0 %1800
  %1804 = vset.pattern.permute.xlu0 0
  %1805 = vperm.xlu0 %1804, %v1755
  %v1806 = vpop.permute.xlu0 %1805
  %1809 = vset.pattern.permute.xlu0 0
  %1810 = vperm.xlu0 %1809, %v1756
  %v1811 = vpop.permute.xlu0 %1810
  %1814 = vset.pattern.permute.xlu0 0
  %1815 = vperm.xlu0 %1814, %v1757
  %v1816 = vpop.permute.xlu0 %1815
  %1819 = vset.pattern.permute.xlu0 0
  %1820 = vperm.xlu0 %1819, %v1758
  %v1821 = vpop.permute.xlu0 %1820
  %1824 = vset.pattern.permute.xlu0 0
  %1825 = vperm.xlu0 %1824, %v1759
  %v1826 = vpop.permute.xlu0 %1825
  %1829 = vset.pattern.permute.xlu0 0
  %1830 = vperm.xlu0 %1829, %v1760
  %v1831 = vpop.permute.xlu0 %1830
  %1834 = vset.pattern.permute.xlu0 0
  %1835 = vperm.xlu0 %1834, %v1761
  %v1836 = vpop.permute.xlu0 %1835
  %1839 = vset.pattern.permute.xlu0 0
  %1840 = vperm.xlu0 %1839, %v1762
  %v1841 = vpop.permute.xlu0 %1840
  %1844 = vset.pattern.permute.xlu0 0
  %1845 = vperm.xlu0 %1844, %v1763
  %v1846 = vpop.permute.xlu0 %1845
  %1849 = vset.pattern.permute.xlu0 0
  %1850 = vperm.xlu0 %1849, %v1764
  %v1851 = vpop.permute.xlu0 %1850
  %1854 = vset.pattern.permute.xlu0 0
  %1855 = vperm.xlu0 %1854, %v1765
  %v1856 = vpop.permute.xlu0 %1855
  %1859 = vset.pattern.permute.xlu0 0
  %1860 = vperm.xlu0 %1859, %v1766
  %v1861 = vpop.permute.xlu0 %1860
  %1864 = vset.pattern.permute.xlu0 0
  %1865 = vperm.xlu0 %1864, %v1767
  %v1866 = vpop.permute.xlu0 %1865
  %1869 = vset.pattern.permute.xlu0 0
  %1870 = vperm.xlu0 %1869, %v1768
  %v1871 = vpop.permute.xlu0 %1870
  %1874 = vset.pattern.permute.xlu0 0
  %1875 = vperm.xlu0 %1874, %v1769
  %v1876 = vpop.permute.xlu0 %1875
  %1879 = vset.pattern.permute.xlu0 0
  %1880 = vperm.xlu0 %1879, %v1770
  %v1881 = vpop.permute.xlu0 %1880
  %1884 = vset.pattern.permute.xlu0 0
  %1885 = vperm.xlu0 %1884, %v1771
  %v1886 = vpop.permute.xlu0 %1885
  %1889 = vset.pattern.permute.xlu0 0
  %1890 = vperm.xlu0 %1889, %v1772
  %v1891 = vpop.permute.xlu0 %1890
  %1894 = vset.pattern.permute.xlu0 0
  %1895 = vperm.xlu0 %1894, %v1773
  %v1896 = vpop.permute.xlu0 %1895
  %1899 = vset.pattern.permute.xlu0 0
  %1900 = vperm.xlu0 %1899, %v1774
  %v1901 = vpop.permute.xlu0 %1900
  %1904 = vset.pattern.permute.xlu0 0
  %1905 = vperm.xlu0 %1904, %v1775
  %v1906 = vpop.permute.xlu0 %1905
  %1909 = vset.pattern.permute.xlu0 0
  %1910 = vperm.xlu0 %1909, %v1776
  %v1911 = vpop.permute.xlu0 %1910
  %1914 = vset.pattern.permute.xlu0 0
  %1915 = vperm.xlu0 %1914, %v1777
  %v1916 = vpop.permute.xlu0 %1915
  %1919 = vset.pattern.permute.xlu0 0
  %1920 = vperm.xlu0 %1919, %v1778
  %v1921 = vpop.permute.xlu0 %1920
  %1924 = vset.pattern.permute.xlu0 0
  %1925 = vperm.xlu0 %1924, %v1779
  %v1926 = vpop.permute.xlu0 %1925
  %1929 = vset.pattern.permute.xlu0 0
  %1930 = vperm.xlu0 %1929, %v1780
  %v1931 = vpop.permute.xlu0 %1930
  %1934 = vset.pattern.permute.xlu0 0
  %1935 = vperm.xlu0 %1934, %v1781
  %v1936 = vpop.permute.xlu0 %1935
  %1939 = vset.pattern.permute.xlu0 0
  %1940 = vperm.xlu0 %1939, %v1782
  %v1941 = vpop.permute.xlu0 %1940
  %v1975 = vunpack.c.l.b16 %v1719
  %v1976 = vunpack.c.h.b16 %v1719
  %v1977 = vunpack.c.l.b16 %v1720
  %v1978 = vunpack.c.h.b16 %v1720
  %v1979 = vunpack.c.l.b16 %v1721
  %v1980 = vunpack.c.h.b16 %v1721
  %v1981 = vunpack.c.l.b16 %v1722
  %v1982 = vunpack.c.h.b16 %v1722
  %v1983 = vunpack.c.l.b16 %v1723
  %v1984 = vunpack.c.h.b16 %v1723
  %v1985 = vunpack.c.l.b16 %v1724
  %v1986 = vunpack.c.h.b16 %v1724
  %v1987 = vunpack.c.l.b16 %v1725
  %v1988 = vunpack.c.h.b16 %v1725
  %v1989 = vunpack.c.l.b16 %v1726
  %v1990 = vunpack.c.h.b16 %v1726
  %v1991 = vunpack.c.l.b16 %v1727
  %v1992 = vunpack.c.h.b16 %v1727
  %v1993 = vunpack.c.l.b16 %v1728
  %v1994 = vunpack.c.h.b16 %v1728
  %v1995 = vunpack.c.l.b16 %v1729
  %v1996 = vunpack.c.h.b16 %v1729
  %v1997 = vunpack.c.l.b16 %v1730
  %v1998 = vunpack.c.h.b16 %v1730
  %v1999 = vunpack.c.l.b16 %v1731
  %v2000 = vunpack.c.h.b16 %v1731
  %v2001 = vunpack.c.l.b16 %v1732
  %v2002 = vunpack.c.h.b16 %v1732
  %v2003 = vunpack.c.l.b16 %v1733
  %v2004 = vunpack.c.h.b16 %v1733
  %v2005 = vunpack.c.l.b16 %v1734
  %v2006 = vunpack.c.h.b16 %v1734
  %v2007 = vunpack.c.l.b16 %v1735
  %v2008 = vunpack.c.h.b16 %v1735
  %v2009 = vunpack.c.l.b16 %v1736
  %v2010 = vunpack.c.h.b16 %v1736
  %v2011 = vunpack.c.l.b16 %v1737
  %v2012 = vunpack.c.h.b16 %v1737
  %v2013 = vunpack.c.l.b16 %v1738
  %v2014 = vunpack.c.h.b16 %v1738
  %v2015 = vunpack.c.l.b16 %v1739
  %v2016 = vunpack.c.h.b16 %v1739
  %v2017 = vunpack.c.l.b16 %v1740
  %v2018 = vunpack.c.h.b16 %v1740
  %v2019 = vunpack.c.l.b16 %v1741
  %v2020 = vunpack.c.h.b16 %v1741
  %v2021 = vunpack.c.l.b16 %v1742
  %v2022 = vunpack.c.h.b16 %v1742
  %v2023 = vunpack.c.l.b16 %v1743
  %v2024 = vunpack.c.h.b16 %v1743
  %v2025 = vunpack.c.l.b16 %v1744
  %v2026 = vunpack.c.h.b16 %v1744
  %v2027 = vunpack.c.l.b16 %v1745
  %v2028 = vunpack.c.h.b16 %v1745
  %v2029 = vunpack.c.l.b16 %v1746
  %v2030 = vunpack.c.h.b16 %v1746
  %v2031 = vunpack.c.l.b16 %v1747
  %v2032 = vunpack.c.h.b16 %v1747
  %v2033 = vunpack.c.l.b16 %v1748
  %v2034 = vunpack.c.h.b16 %v1748
  %v2035 = vunpack.c.l.b16 %v1749
  %v2036 = vunpack.c.h.b16 %v1749
  %v2037 = vunpack.c.l.b16 %v1750
  %v2038 = vunpack.c.h.b16 %v1750
  %v2039 = vpack.c.b16 %v1977, %v1975
  %v2040 = vpack.c.b16 %v1978, %v1976
  %v2041 = vpack.c.b16 %v1981, %v1979
  %v2042 = vpack.c.b16 %v1982, %v1980
  %v2043 = vpack.c.b16 %v1985, %v1983
  %v2044 = vpack.c.b16 %v1986, %v1984
  %v2045 = vpack.c.b16 %v1989, %v1987
  %v2046 = vpack.c.b16 %v1990, %v1988
  %v2047 = vpack.c.b16 %v1993, %v1991
  %v2048 = vpack.c.b16 %v1994, %v1992
  %v2049 = vpack.c.b16 %v1997, %v1995
  %v2050 = vpack.c.b16 %v1998, %v1996
  %v2051 = vpack.c.b16 %v2001, %v1999
  %v2052 = vpack.c.b16 %v2002, %v2000
  %v2053 = vpack.c.b16 %v2005, %v2003
  %v2054 = vpack.c.b16 %v2006, %v2004
  %v2055 = vpack.c.b16 %v2009, %v2007
  %v2056 = vpack.c.b16 %v2010, %v2008
  %v2057 = vpack.c.b16 %v2013, %v2011
  %v2058 = vpack.c.b16 %v2014, %v2012
  %v2059 = vpack.c.b16 %v2017, %v2015
  %v2060 = vpack.c.b16 %v2018, %v2016
  %v2061 = vpack.c.b16 %v2021, %v2019
  %v2062 = vpack.c.b16 %v2022, %v2020
  %v2063 = vpack.c.b16 %v2025, %v2023
  %v2064 = vpack.c.b16 %v2026, %v2024
  %v2065 = vpack.c.b16 %v2029, %v2027
  %v2066 = vpack.c.b16 %v2030, %v2028
  %v2067 = vpack.c.b16 %v2033, %v2031
  %v2068 = vpack.c.b16 %v2034, %v2032
  %v2069 = vpack.c.b16 %v2037, %v2035
  %v2070 = vpack.c.b16 %v2038, %v2036
  %2103 = vmatprep.subr.bf16.mxu0 0
  %2104 = vmatpush1.bf16.msra.mxu0 %v1133
  %2105 = vmatprep.subr.bf16.mxu0 0
  %2106 = vmatpush1.bf16.msra.mxu0 %v1132
  %2107 = vmatprep.subr.bf16.mxu0 0
  %2108 = vmatpush1.bf16.msra.mxu0 %v1131
  %2109 = vmatprep.subr.bf16.mxu0 0
  %2110 = vmatpush1.bf16.msra.mxu0 %v1130
  %2111 = vmatprep.subr.bf16.mxu0 0
  %2112 = vmatpush1.bf16.msra.mxu0 %v1129
  %2113 = vmatprep.subr.bf16.mxu0 0
  %2114 = vmatpush1.bf16.msra.mxu0 %v1128
  %2115 = vmatprep.subr.bf16.mxu0 0
  %2116 = vmatpush1.bf16.msra.mxu0 %v1127
  %2117 = vmatprep.subr.bf16.mxu0 0
  %2118 = vmatpush1.bf16.msra.mxu0 %v1126
  %2119 = vmatprep.subr.bf16.mxu0 0
  %2120 = vmatpush2.bf16.msra.mxu0 %v1141
  %2121 = vmatprep.subr.bf16.mxu0 0
  %2122 = vmatpush2.bf16.msra.mxu0 %v1140
  %2123 = vmatprep.subr.bf16.mxu0 0
  %2124 = vmatpush2.bf16.msra.mxu0 %v1139
  %2125 = vmatprep.subr.bf16.mxu0 0
  %2126 = vmatpush2.bf16.msra.mxu0 %v1138
  %2127 = vmatprep.subr.bf16.mxu0 0
  %2128 = vmatpush2.bf16.msra.mxu0 %v1137
  %2129 = vmatprep.subr.bf16.mxu0 0
  %2130 = vmatpush2.bf16.msra.mxu0 %v1136
  %2131 = vmatprep.subr.bf16.mxu0 0
  %2132 = vmatpush2.bf16.msra.mxu0 %v1135
  %2133 = vmatprep.subr.bf16.mxu0 0
  %2134 = vmatpush2.bf16.msra.mxu0 %v1134
  %2135 = vmatprep.mubr.bf16.mxu0 %v2040
  %2136 = vmatmul.mubr.bf16.gmra.mxu0 %v2039
  %v2137 = vpop.f32.mrf.mxu0
  %v2138 = vadd.f32 %v1786, %v2137
  %v2139 = vpop.f32.mrf.mxu0
  %v2140 = vpop.f32.mrf.mxu0
  %v2141 = vadd.f32 %v1791, %v2140
  %v2142 = vpop.f32.mrf.mxu0
  %2143 = vmatprep.mubr.bf16.mxu0 %v2042
  %2144 = vmatmul.mubr.bf16.gmra.mxu0 %v2041
  %v2145 = vpop.f32.mrf.mxu0
  %v2146 = vadd.f32 %v1796, %v2145
  %v2147 = vpop.f32.mrf.mxu0
  %v2148 = vpop.f32.mrf.mxu0
  %v2149 = vadd.f32 %v1801, %v2148
  %v2150 = vpop.f32.mrf.mxu0
  %2151 = vmatprep.mubr.bf16.mxu0 %v2044
  %2152 = vmatmul.mubr.bf16.gmra.mxu0 %v2043
  %v2153 = vpop.f32.mrf.mxu0
  %v2154 = vadd.f32 %v1806, %v2153
  %v2155 = vpop.f32.mrf.mxu0
  %v2156 = vpop.f32.mrf.mxu0
  %v2157 = vadd.f32 %v1811, %v2156
  %v2158 = vpop.f32.mrf.mxu0
  %2159 = vmatprep.mubr.bf16.mxu0 %v2046
  %2160 = vmatmul.mubr.bf16.gmra.mxu0 %v2045
  %v2161 = vpop.f32.mrf.mxu0
  %v2162 = vadd.f32 %v1816, %v2161
  %v2163 = vpop.f32.mrf.mxu0
  %v2164 = vpop.f32.mrf.mxu0
  %v2165 = vadd.f32 %v1821, %v2164
  %v2166 = vpop.f32.mrf.mxu0
  %2167 = vmatprep.mubr.bf16.mxu0 %v2048
  %2168 = vmatmul.mubr.bf16.gmra.mxu0 %v2047
  %v2169 = vpop.f32.mrf.mxu0
  %v2170 = vadd.f32 %v1826, %v2169
  %v2171 = vpop.f32.mrf.mxu0
  %v2172 = vpop.f32.mrf.mxu0
  %v2173 = vadd.f32 %v1831, %v2172
  %v2174 = vpop.f32.mrf.mxu0
  %2175 = vmatprep.mubr.bf16.mxu0 %v2050
  %2176 = vmatmul.mubr.bf16.gmra.mxu0 %v2049
  %v2177 = vpop.f32.mrf.mxu0
  %v2178 = vadd.f32 %v1836, %v2177
  %v2179 = vpop.f32.mrf.mxu0
  %v2180 = vpop.f32.mrf.mxu0
  %v2181 = vadd.f32 %v1841, %v2180
  %v2182 = vpop.f32.mrf.mxu0
  %2183 = vmatprep.mubr.bf16.mxu0 %v2052
  %2184 = vmatmul.mubr.bf16.gmra.mxu0 %v2051
  %v2185 = vpop.f32.mrf.mxu0
  %v2186 = vadd.f32 %v1846, %v2185
  %v2187 = vpop.f32.mrf.mxu0
  %v2188 = vpop.f32.mrf.mxu0
  %v2189 = vadd.f32 %v1851, %v2188
  %v2190 = vpop.f32.mrf.mxu0
  %2191 = vmatprep.mubr.bf16.mxu0 %v2054
  %2192 = vmatmul.mubr.bf16.gmra.mxu0 %v2053
  %v2193 = vpop.f32.mrf.mxu0
  %v2194 = vadd.f32 %v1856, %v2193
  %v2195 = vpop.f32.mrf.mxu0
  %v2196 = vpop.f32.mrf.mxu0
  %v2197 = vadd.f32 %v1861, %v2196
  %v2198 = vpop.f32.mrf.mxu0
  %2199 = vmatprep.mubr.bf16.mxu0 %v2056
  %2200 = vmatmul.mubr.bf16.gmra.mxu0 %v2055
  %v2201 = vpop.f32.mrf.mxu0
  %v2202 = vadd.f32 %v1866, %v2201
  %v2203 = vpop.f32.mrf.mxu0
  %v2204 = vpop.f32.mrf.mxu0
  %v2205 = vadd.f32 %v1871, %v2204
  %v2206 = vpop.f32.mrf.mxu0
  %2207 = vmatprep.mubr.bf16.mxu0 %v2058
  %2208 = vmatmul.mubr.bf16.gmra.mxu0 %v2057
  %v2209 = vpop.f32.mrf.mxu0
  %v2210 = vadd.f32 %v1876, %v2209
  %v2211 = vpop.f32.mrf.mxu0
  %v2212 = vpop.f32.mrf.mxu0
  %v2213 = vadd.f32 %v1881, %v2212
  %v2214 = vpop.f32.mrf.mxu0
  %2215 = vmatprep.mubr.bf16.mxu0 %v2060
  %2216 = vmatmul.mubr.bf16.gmra.mxu0 %v2059
  %v2217 = vpop.f32.mrf.mxu0
  %v2218 = vadd.f32 %v1886, %v2217
  %v2219 = vpop.f32.mrf.mxu0
  %v2220 = vpop.f32.mrf.mxu0
  %v2221 = vadd.f32 %v1891, %v2220
  %v2222 = vpop.f32.mrf.mxu0
  %2223 = vmatprep.mubr.bf16.mxu0 %v2062
  %2224 = vmatmul.mubr.bf16.gmra.mxu0 %v2061
  %v2225 = vpop.f32.mrf.mxu0
  %v2226 = vadd.f32 %v1896, %v2225
  %v2227 = vpop.f32.mrf.mxu0
  %v2228 = vpop.f32.mrf.mxu0
  %v2229 = vadd.f32 %v1901, %v2228
  %v2230 = vpop.f32.mrf.mxu0
  %2231 = vmatprep.mubr.bf16.mxu0 %v2064
  %2232 = vmatmul.mubr.bf16.gmra.mxu0 %v2063
  %v2233 = vpop.f32.mrf.mxu0
  %v2234 = vadd.f32 %v1906, %v2233
  %v2235 = vpop.f32.mrf.mxu0
  %v2236 = vpop.f32.mrf.mxu0
  %v2237 = vadd.f32 %v1911, %v2236
  %v2238 = vpop.f32.mrf.mxu0
  %2239 = vmatprep.mubr.bf16.mxu0 %v2066
  %2240 = vmatmul.mubr.bf16.gmra.mxu0 %v2065
  %v2241 = vpop.f32.mrf.mxu0
  %v2242 = vadd.f32 %v1916, %v2241
  %v2243 = vpop.f32.mrf.mxu0
  %v2244 = vpop.f32.mrf.mxu0
  %v2245 = vadd.f32 %v1921, %v2244
  %v2246 = vpop.f32.mrf.mxu0
  %2247 = vmatprep.mubr.bf16.mxu0 %v2068
  %2248 = vmatmul.mubr.bf16.gmra.mxu0 %v2067
  %v2249 = vpop.f32.mrf.mxu0
  %v2250 = vadd.f32 %v1926, %v2249
  %v2251 = vpop.f32.mrf.mxu0
  %v2252 = vpop.f32.mrf.mxu0
  %v2253 = vadd.f32 %v1931, %v2252
  %v2254 = vpop.f32.mrf.mxu0
  %2255 = vmatprep.mubr.bf16.mxu0 %v2070
  %2256 = vmatmul.mubr.bf16.gmra.mxu0 %v2069
  %v2257 = vpop.f32.mrf.mxu0
  %v2258 = vadd.f32 %v1936, %v2257
  %v2259 = vpop.f32.mrf.mxu0
  %v2260 = vpop.f32.mrf.mxu0
  %v2261 = vadd.f32 %v1941, %v2260
  %v2262 = vpop.f32.mrf.mxu0
  %2263 = vdwg.mxu0
  %v2264 = vmax.f32 %v2138, 0.0
  %v2265 = vmax.f32 %v2141, 0.0
  %v2266 = vmax.f32 %v2146, 0.0
  %v2267 = vmax.f32 %v2149, 0.0
  %v2268 = vmax.f32 %v2154, 0.0
  %v2269 = vmax.f32 %v2157, 0.0
  %v2270 = vmax.f32 %v2162, 0.0
  %v2271 = vmax.f32 %v2165, 0.0
  %v2272 = vmax.f32 %v2170, 0.0
  %v2273 = vmax.f32 %v2173, 0.0
  %v2274 = vmax.f32 %v2178, 0.0
  %v2275 = vmax.f32 %v2181, 0.0
  %v2276 = vmax.f32 %v2186, 0.0
  %v2277 = vmax.f32 %v2189, 0.0
  %v2278 = vmax.f32 %v2194, 0.0
  %v2279 = vmax.f32 %v2197, 0.0
  %v2280 = vmax.f32 %v2202, 0.0
  %v2281 = vmax.f32 %v2205, 0.0
  %v2282 = vmax.f32 %v2210, 0.0
  %v2283 = vmax.f32 %v2213, 0.0
  %v2284 = vmax.f32 %v2218, 0.0
  %v2285 = vmax.f32 %v2221, 0.0
  %v2286 = vmax.f32 %v2226, 0.0
  %v2287 = vmax.f32 %v2229, 0.0
  %v2288 = vmax.f32 %v2234, 0.0
  %v2289 = vmax.f32 %v2237, 0.0
  %v2290 = vmax.f32 %v2242, 0.0
  %v2291 = vmax.f32 %v2245, 0.0
  %v2292 = vmax.f32 %v2250, 0.0
  %v2293 = vmax.f32 %v2253, 0.0
  %v2294 = vmax.f32 %v2258, 0.0
  %v2295 = vmax.f32 %v2261, 0.0
  %v2296 = vld [vmem:[%s7] sm:$0x3]
  %v2298 = vlaneseq
  %v2299 = vshrl.u32 %v2298, 7
  %v2300 = vsub.s32 0, %v2299
  %v2301 = vrot.slane %v2296, %v2300
  %v2302 = vlaneseq
  %v2303 = vshrl.u32 %v2302, 7
  %v2304 = vsub.s32 1, %v2303
  %v2305 = vrot.slane %v2296, %v2304
  %2308 = vmatprep.subr.mxu0 0.0
  %2309 = vmatpush1.msra.mxu0 %v1702
  %2310 = vmatprep.subr.mxu0 0.0
  %2311 = vmatpush1.msra.mxu0 %v1701
  %2312 = vmatprep.subr.mxu0 0.0
  %2313 = vmatpush1.msra.mxu0 %v1700
  %2314 = vmatprep.subr.mxu0 0.0
  %2315 = vmatpush1.msra.mxu0 %v1699
  %2316 = vmatprep.subr.mxu0 0.0
  %2317 = vmatpush1.msra.mxu0 %v1698
  %2318 = vmatprep.subr.mxu0 0.0
  %2319 = vmatpush1.msra.mxu0 %v1697
  %2320 = vmatprep.subr.mxu0 0.0
  %2321 = vmatpush1.msra.mxu0 %v1696
  %2322 = vmatprep.subr.mxu0 0.0
  %2323 = vmatpush1.msra.mxu0 %v1695
  %2324 = vmatprep.subr.mxu0 0.0
  %2325 = vmatpush1.msra.mxu0 %v1694
  %2326 = vmatprep.subr.mxu0 0.0
  %2327 = vmatpush1.msra.mxu0 %v1693
  %2328 = vmatprep.subr.mxu0 0.0
  %2329 = vmatpush1.msra.mxu0 %v1692
  %2330 = vmatprep.subr.mxu0 0.0
  %2331 = vmatpush1.msra.mxu0 %v1691
  %2332 = vmatprep.subr.mxu0 0.0
  %2333 = vmatpush1.msra.mxu0 %v1690
  %2334 = vmatprep.subr.mxu0 0.0
  %2335 = vmatpush1.msra.mxu0 %v1689
  %2336 = vmatprep.subr.mxu0 0.0
  %2337 = vmatpush1.msra.mxu0 %v1688
  %2338 = vmatprep.subr.mxu0 0.0
  %2339 = vmatpush1.msra.mxu0 %v1687
  %2340 = vmatprep.subr.mxu0 0.0
  %2341 = vmatpush2.msra.mxu0 %v1718
  %2342 = vmatprep.subr.mxu0 0.0
  %2343 = vmatpush2.msra.mxu0 %v1717
  %2344 = vmatprep.subr.mxu0 0.0
  %2345 = vmatpush2.msra.mxu0 %v1716
  %2346 = vmatprep.subr.mxu0 0.0
  %2347 = vmatpush2.msra.mxu0 %v1715
  %2348 = vmatprep.subr.mxu0 0.0
  %2349 = vmatpush2.msra.mxu0 %v1714
  %2350 = vmatprep.subr.mxu0 0.0
  %2351 = vmatpush2.msra.mxu0 %v1713
  %2352 = vmatprep.subr.mxu0 0.0
  %2353 = vmatpush2.msra.mxu0 %v1712
  %2354 = vmatprep.subr.mxu0 0.0
  %2355 = vmatpush2.msra.mxu0 %v1711
  %2356 = vmatprep.subr.mxu0 0.0
  %2357 = vmatpush2.msra.mxu0 %v1710
  %2358 = vmatprep.subr.mxu0 0.0
  %2359 = vmatpush2.msra.mxu0 %v1709
  %2360 = vmatprep.subr.mxu0 0.0
  %2361 = vmatpush2.msra.mxu0 %v1708
  %2362 = vmatprep.subr.mxu0 0.0
  %2363 = vmatpush2.msra.mxu0 %v1707
  %2364 = vmatprep.subr.mxu0 0.0
  %2365 = vmatpush2.msra.mxu0 %v1706
  %2366 = vmatprep.subr.mxu0 0.0
  %2367 = vmatpush2.msra.mxu0 %v1705
  %2368 = vmatprep.subr.mxu0 0.0
  %2369 = vmatpush2.msra.mxu0 %v1704
  %2370 = vmatprep.subr.mxu0 0.0
  %2371 = vmatpush2.msra.mxu0 %v1703
  %2372 = vmatprep.mubr.f32.mxu0 %v2305
  %2373 = vmatmul.mubr.f32.gmra.mxu0 %v2301
  %v2374 = vpop.f32.mrf.mxu0
  %v2375 = vadd.f32 0.0, %v2374
  %v2376 = vpop.f32.mrf.mxu0
  %2377 = vdwg.mxu0
  %v2378 = vld [vmem:[%s8] sm:$0x3]
  %v2380 = vlaneseq
  %v2381 = vshrl.u32 %v2380, 7
  %v2382 = vsub.s32 0, %v2381
  %v2383 = vrot.slane %v2378, %v2382
  %v2384 = vlaneseq
  %v2385 = vshrl.u32 %v2384, 7
  %v2386 = vsub.s32 1, %v2385
  %v2387 = vrot.slane %v2378, %v2386
  %2390 = vmatprep.subr.mxu0 0.0
  %2391 = vmatpush1.msra.mxu0 %v2279
  %2392 = vmatprep.subr.mxu0 0.0
  %2393 = vmatpush1.msra.mxu0 %v2278
  %2394 = vmatprep.subr.mxu0 0.0
  %2395 = vmatpush1.msra.mxu0 %v2277
  %2396 = vmatprep.subr.mxu0 0.0
  %2397 = vmatpush1.msra.mxu0 %v2276
  %2398 = vmatprep.subr.mxu0 0.0
  %2399 = vmatpush1.msra.mxu0 %v2275
  %2400 = vmatprep.subr.mxu0 0.0
  %2401 = vmatpush1.msra.mxu0 %v2274
  %2402 = vmatprep.subr.mxu0 0.0
  %2403 = vmatpush1.msra.mxu0 %v2273
  %2404 = vmatprep.subr.mxu0 0.0
  %2405 = vmatpush1.msra.mxu0 %v2272
  %2406 = vmatprep.subr.mxu0 0.0
  %2407 = vmatpush1.msra.mxu0 %v2271
  %2408 = vmatprep.subr.mxu0 0.0
  %2409 = vmatpush1.msra.mxu0 %v2270
  %2410 = vmatprep.subr.mxu0 0.0
  %2411 = vmatpush1.msra.mxu0 %v2269
  %2412 = vmatprep.subr.mxu0 0.0
  %2413 = vmatpush1.msra.mxu0 %v2268
  %2414 = vmatprep.subr.mxu0 0.0
  %2415 = vmatpush1.msra.mxu0 %v2267
  %2416 = vmatprep.subr.mxu0 0.0
  %2417 = vmatpush1.msra.mxu0 %v2266
  %2418 = vmatprep.subr.mxu0 0.0
  %2419 = vmatpush1.msra.mxu0 %v2265
  %2420 = vmatprep.subr.mxu0 0.0
  %2421 = vmatpush1.msra.mxu0 %v2264
  %2422 = vmatprep.subr.mxu0 0.0
  %2423 = vmatpush2.msra.mxu0 %v2295
  %2424 = vmatprep.subr.mxu0 0.0
  %2425 = vmatpush2.msra.mxu0 %v2294
  %2426 = vmatprep.subr.mxu0 0.0
  %2427 = vmatpush2.msra.mxu0 %v2293
  %2428 = vmatprep.subr.mxu0 0.0
  %2429 = vmatpush2.msra.mxu0 %v2292
  %2430 = vmatprep.subr.mxu0 0.0
  %2431 = vmatpush2.msra.mxu0 %v2291
  %2432 = vmatprep.subr.mxu0 0.0
  %2433 = vmatpush2.msra.mxu0 %v2290
  %2434 = vmatprep.subr.mxu0 0.0
  %2435 = vmatpush2.msra.mxu0 %v2289
  %2436 = vmatprep.subr.mxu0 0.0
  %2437 = vmatpush2.msra.mxu0 %v2288
  %2438 = vmatprep.subr.mxu0 0.0
  %2439 = vmatpush2.msra.mxu0 %v2287
  %2440 = vmatprep.subr.mxu0 0.0
  %2441 = vmatpush2.msra.mxu0 %v2286
  %2442 = vmatprep.subr.mxu0 0.0
  %2443 = vmatpush2.msra.mxu0 %v2285
  %2444 = vmatprep.subr.mxu0 0.0
  %2445 = vmatpush2.msra.mxu0 %v2284
  %2446 = vmatprep.subr.mxu0 0.0
  %2447 = vmatpush2.msra.mxu0 %v2283
  %2448 = vmatprep.subr.mxu0 0.0
  %2449 = vmatpush2.msra.mxu0 %v2282
  %2450 = vmatprep.subr.mxu0 0.0
  %2451 = vmatpush2.msra.mxu0 %v2281
  %2452 = vmatprep.subr.mxu0 0.0
  %2453 = vmatpush2.msra.mxu0 %v2280
  %2454 = vmatprep.mubr.f32.mxu0 %v2387
  %2455 = vmatmul.mubr.f32.gmra.mxu0 %v2383
  %v2456 = vpop.f32.mrf.mxu0
  %v2457 = vadd.f32 0.0, %v2456
  %v2458 = vpop.f32.mrf.mxu0
  %2459 = vdwg.mxu0
  %v2461 = vrot.slane %v2457, 7
  %vm2463 = vcmask 1040384
  %v2464 = vsel %vm2463, %v2375, %v2461
  %v2465 = vld [vmem:[%s9] sm:$0x3]
  %2467 = vset.pattern.permute.xlu0 0
  %2468 = vperm.xlu0 %2467, %v2465
  %v2469 = vpop.permute.xlu0 %2468
  %v2471 = vadd.f32 %v2464, %v2469
  %2472 = vst [vmem:[%s10] sm:$0x3] %v2471
  // Predicated region
  $region42: #{critic2_forward.1} parent=0 // pred_check
    _
  $region43: #{critic2_forward.1} parent=0 // pred_check_branch
    %2474 = sbr.rel (0) target = $region45
  $region44: #{critic2_forward.1} parent=0 // pred_region
    _
  $region45: #{critic2_forward.1} parent=0 // pred_fallthru
    _
  // Predicated region
  $region46: #{critic2_forward.1} parent=0 // pred_check
    _
  $region47: #{critic2_forward.1} parent=0 // pred_check_branch
    %2476 = sbr.rel (0) target = $region49
  $region48: #{critic2_forward.1} parent=0 // pred_region
    _
  $region49: #{critic2_forward.1} parent=0 // pred_fallthru
    _

</llo_original>
